<compile_context>
chip_gen: v7x
topology: tpu7x:2x2x1
jax: 0.10.0
libtpu: 0.0.40
codegen_flags: <defaults>
</compile_context>

<pallas_src>
import jax
import jax.numpy as jnp
from jax.experimental import pallas as pl
from jax.experimental.pallas import tpu as pltpu

# ---------------------------------------------------------------------------
# Geometry constants
# ---------------------------------------------------------------------------
KS = 5                                   # conv kernel size
H1, W1, C1, CO1 = 32, 32, 3, 6           # conv1 input / out-channels
OH1 = H1 - KS + 1                        # 28 (conv1 output spatial)
PH1, PW1 = OH1 // 2, OH1 // 2            # 14, 14 (pooled)
H2, W2, C2, CO2 = PH1, PW1, CO1, 16      # conv2 input / out-channels
OH2 = H2 - KS + 1                        # 10
PH2, PW2 = OH2 // 2, OH2 // 2            # 5, 5
LK = 128                                 # padded lane width of activation rows
LN = 128                                 # padded lane width of matmul outputs


# ---------------------------------------------------------------------------
# One-time parameter preparation (hoisted out of the forward pass)
# ---------------------------------------------------------------------------
def _banded_conv_weights(w, w_in, cp):
    """Banded conv weight for output-column parity `cp`.

    Returns (KS*LK, LN) bf16 with
      W[ki*LK + (w_idx*Cin + ci), pw*Cout + co] =
        w[co, ci, ki, w_idx - (2*pw + cp)]   if 0 <= w_idx-(2*pw+cp) < KS
    so that (rows of the input window, concatenated over ki) @ W gives the
    conv outputs at columns ow = 2*pw + cp for every output row.
    """
    cout, cin, ks, _ = w.shape
    ow = w_in - ks + 1
    pwn = ow // 2
    T = jnp.zeros((ks, w_in, cin, pwn, cout), jnp.float32)
    for pw in range(pwn):
        for kj in range(ks):
            T = T.at[:, 2 * pw + cp + kj, :, pw, :].set(
                jnp.transpose(w[:, :, :, kj].astype(jnp.float32), (2, 1, 0)))
    T = T.reshape(ks, w_in * cin, pwn * cout)
    T = jnp.pad(T, ((0, 0), (0, LK - w_in * cin), (0, LN - pwn * cout)))
    return T.reshape(ks * LK, LN).astype(jnp.bfloat16)


def _tiled_bias(b, reps):
    """Conv bias replicated to the (pw*Cout + co) lane layout, padded to LN."""
    t = jnp.tile(b.astype(jnp.float32), reps)
    return jnp.pad(t, (0, LN - t.shape[0])).reshape(1, LN)


def prepare_params(p):
    def pad_fc(w, b):
        kin, nout = w.shape
        wp = jnp.pad(w.astype(jnp.float32), ((0, LN - kin), (0, LN - nout)))
        bp = jnp.pad(b.astype(jnp.float32), (0, LN - nout)).reshape(1, LN)
        return wp.astype(jnp.bfloat16), bp

    wc1 = jnp.stack([_banded_conv_weights(p["conv1_w"], W1, cp) for cp in (0, 1)])
    wc2 = jnp.stack([_banded_conv_weights(p["conv2_w"], W2, cp) for cp in (0, 1)])
    b1c = _tiled_bias(p["conv1_b"], PW1)      # 14 * 6  = 84  -> 128
    b2c = _tiled_bias(p["conv2_b"], PW2)      # 5  * 16 = 80  -> 128

    # fc1 rows are in PyTorch (c, h, w) flatten order; regroup them to the
    # kernel's (h, w*16 + c) layout with per-row-block lane padding 80 -> 128.
    w1 = p["fc1_w"].astype(jnp.float32).reshape(CO2, PH2, PW2, 120)
    w1 = jnp.transpose(w1, (1, 2, 0, 3)).reshape(PH2, PW2 * CO2, 120)
    w1 = jnp.pad(w1, ((0, 0), (0, LN - PW2 * CO2), (0, LN - 120)))
    w1f = w1.reshape(PH2 * LN, LN).astype(jnp.bfloat16)
    b1f = jnp.pad(p["fc1_b"].astype(jnp.float32), (0, LN - 120)).reshape(1, LN)

    w2f, b2f = pad_fc(p["fc2_w"], p["fc2_b"])
    w3f, b3f = pad_fc(p["fc3_w"], p["fc3_b"])

    return dict(wc1=wc1, b1c=b1c, wc2=wc2, b2c=b2c,
                w1f=w1f, b1f=b1f, w2f=w2f, b2f=b2f, w3f=w3f, b3f=b3f)


# ---------------------------------------------------------------------------
# Fused whole-network Pallas kernel (one grid step == one sample)
# ---------------------------------------------------------------------------
def _lenet_kernel(x_ref, wc1_ref, b1c_ref, wc2_ref, b2c_ref,
                  w1f_ref, b1f_ref, w2f_ref, b2f_ref, w3f_ref, b3f_ref,
                  o_ref):

    def conv_bias_relu_pool(rows, wc_ref, b_ref, oh):
        # rows: (H_in, LK) f32.  Valid conv (stride 1) via banded weights,
        # fused with bias + ReLU + 2x2/2 max-pool.  Returns (oh//2, LN) f32.
        xcat = jnp.concatenate([rows[ki:ki + oh, :] for ki in range(KS)],
                               axis=-1).astype(jnp.bfloat16)       # (oh, KS*LK)
        y_even = jnp.dot(xcat, wc_ref[0], preferred_element_type=jnp.float32)
        y_odd = jnp.dot(xcat, wc_ref[1], preferred_element_type=jnp.float32)
        y = jnp.maximum(y_even, y_odd)                             # pool over cols
        y = jnp.concatenate(                                       # pool over rows
            [jnp.maximum(y[2 * p:2 * p + 1, :], y[2 * p + 1:2 * p + 2, :])
             for p in range(oh // 2)], axis=0)
        return jnp.maximum(y + b_ref[...], 0.0)                    # bias + ReLU

    x = x_ref[0]                                                   # (32, 128) f32
    a1 = conv_bias_relu_pool(x, wc1_ref, b1c_ref, OH1)             # (14, 128)
    a2 = conv_bias_relu_pool(a1, wc2_ref, b2c_ref, OH2)            # (5, 128)

    # Flatten (h, w, c) into lanes (fc1 weights were pre-permuted to match).
    xf = jnp.concatenate([a2[p:p + 1, :] for p in range(PH2)], axis=-1)  # (1, 640)
    h = jnp.dot(xf.astype(jnp.bfloat16), w1f_ref[...],
                preferred_element_type=jnp.float32) + b1f_ref[...]
    h = jnp.maximum(h, 0.0)
    h = jnp.dot(h.astype(jnp.bfloat16), w2f_ref[...],
                preferred_element_type=jnp.float32) + b2f_ref[...]
    h = jnp.maximum(h, 0.0)
    h = jnp.dot(h.astype(jnp.bfloat16), w3f_ref[...],
                preferred_element_type=jnp.float32) + b3f_ref[...]
    o_ref[...] = h.reshape(1, 1, LN)


@jax.jit
def net_forward(prepped, x):
    """x: (B, 3, 32, 32) NCHW f32 -> (B, 10) f32 logits."""
    B = x.shape[0]
    # Only per-call XLA glue: NCHW -> (B, H, W*C) rows, zero-padded to 128 lanes.
    xr = jnp.transpose(x, (0, 2, 3, 1)).reshape(B, H1, W1 * C1)
    xr = jnp.pad(xr, ((0, 0), (0, 0), (0, LK - W1 * C1))).astype(jnp.float32)

    out = pl.pallas_call(
        _lenet_kernel,
        out_shape=jax.ShapeDtypeStruct((B, 1, LN), jnp.float32),
        grid=(B,),
        in_specs=[
            pl.BlockSpec((1, H1, LK), lambda b: (b, 0, 0)),        # input rows
            pl.BlockSpec((2, KS * LK, LN), lambda b: (0, 0, 0)),   # conv1 banded W
            pl.BlockSpec((1, LN), lambda b: (0, 0)),               # conv1 bias
            pl.BlockSpec((2, KS * LK, LN), lambda b: (0, 0, 0)),   # conv2 banded W
            pl.BlockSpec((1, LN), lambda b: (0, 0)),               # conv2 bias
            pl.BlockSpec((PH2 * LN, LN), lambda b: (0, 0)),        # fc1 W (permuted)
            pl.BlockSpec((1, LN), lambda b: (0, 0)),               # fc1 bias
            pl.BlockSpec((LN, LN), lambda b: (0, 0)),              # fc2 W
            pl.BlockSpec((1, LN), lambda b: (0, 0)),               # fc2 bias
            pl.BlockSpec((LN, LN), lambda b: (0, 0)),              # fc3 W
            pl.BlockSpec((1, LN), lambda b: (0, 0)),               # fc3 bias
        ],
        out_specs=pl.BlockSpec((1, 1, LN), lambda b: (b, 0, 0)),
        compiler_params=pltpu.CompilerParams(
            dimension_semantics=("parallel",)),
    )(xr, prepped["wc1"], prepped["b1c"], prepped["wc2"], prepped["b2c"],
      prepped["w1f"], prepped["b1f"], prepped["w2f"], prepped["b2f"],
      prepped["w3f"], prepped["b3f"])
    return out[:, 0, :10]


# ---------------------------------------------------------------------------
# Parameter init (matches the PyTorch module's shapes/semantics) + reference
# ---------------------------------------------------------------------------
def init_params(key):
    ks = jax.random.split(key, 10)

    def u(k, shape, fan_in):
        bound = 1.0 / jnp.sqrt(fan_in)
        return jax.random.uniform(k, shape, jnp.float32, -bound, bound)

    return {
        "conv1_w": u(ks[0], (6, 3, 5, 5), 3 * 5 * 5),
        "conv1_b": u(ks[1], (6,), 3 * 5 * 5),
        "conv2_w": u(ks[2], (16, 6, 5, 5), 6 * 5 * 5),
        "conv2_b": u(ks[3], (16,), 6 * 5 * 5),
        # fc1_w rows are in PyTorch flatten order (c, h, w); stored (in, out).
        "fc1_w": u(ks[4], (16 * 5 * 5, 120), 16 * 5 * 5),
        "fc1_b": u(ks[5], (120,), 16 * 5 * 5),
        "fc2_w": u(ks[6], (120, 84), 120),
        "fc2_b": u(ks[7], (84,), 120),
        "fc3_w": u(ks[8], (84, 10), 84),
        "fc3_b": u(ks[9], (10,), 84),
    }


def net_reference(params, x):
    """Pure-JAX f32 reference matching the PyTorch forward exactly."""
    dn = ("NCHW", "OIHW", "NCHW")
    y = jax.lax.conv_general_dilated(x, params["conv1_w"], (1, 1), "VALID",
                                     dimension_numbers=dn)
    y = jax.nn.relu(y + params["conv1_b"][None, :, None, None])
    y = jax.lax.reduce_window(y, -jnp.inf, jax.lax.max,
                              (1, 1, 2, 2), (1, 1, 2, 2), "VALID")
    y = jax.lax.conv_general_dilated(y, params["conv2_w"], (1, 1), "VALID",
                                     dimension_numbers=dn)
    y = jax.nn.relu(y + params["conv2_b"][None, :, None, None])
    y = jax.lax.reduce_window(y, -jnp.inf, jax.lax.max,
                              (1, 1, 2, 2), (1, 1, 2, 2), "VALID")
    y = y.reshape(y.shape[0], -1)                       # (c, h, w) flatten order
    y = jax.nn.relu(y @ params["fc1_w"] + params["fc1_b"])
    y = jax.nn.relu(y @ params["fc2_w"] + params["fc2_b"])
    return y @ params["fc3_w"] + params["fc3_b"]


if __name__ == "__main__":
    key = jax.random.PRNGKey(0)
    k_params, k_x = jax.random.split(key)
    params = init_params(k_params)
    prepped = prepare_params(params)                     # one-time weight prep

    # LeNet requires 32x32 input so flatten size is 16*5*5.  Small batch=2.
    x = jax.random.normal(k_x, (2, 3, 32, 32), jnp.float32)

    out = jax.block_until_ready(net_forward(prepped, x))
    assert out.shape == (2, 10), out.shape
    assert bool(jnp.all(jnp.isfinite(out)))

    # bf16 matmuls (f32 accumulate) -> compare against f32 reference loosely.
    ref = net_reference(params, x)
    max_err = float(jnp.max(jnp.abs(out - ref)))
    assert max_err < 5e-2, f"max abs err vs reference: {max_err}"

    print("KERNEL_OK")
</pallas_src>

<mosaic_0001>
module attributes {stable_mosaic.version = 11 : i64} {
  func.func @_lenet_kernel(%arg0: i32, %arg1: memref<1x32x128xf32, #tpu.memory_space<vmem>>, %arg2: memref<2x640x128xbf16, #tpu.memory_space<vmem>>, %arg3: memref<1x128xf32, #tpu.memory_space<vmem>>, %arg4: memref<2x640x128xbf16, #tpu.memory_space<vmem>>, %arg5: memref<1x128xf32, #tpu.memory_space<vmem>>, %arg6: memref<640x128xbf16, #tpu.memory_space<vmem>>, %arg7: memref<1x128xf32, #tpu.memory_space<vmem>>, %arg8: memref<128x128xbf16, #tpu.memory_space<vmem>>, %arg9: memref<1x128xf32, #tpu.memory_space<vmem>>, %arg10: memref<128x128xbf16, #tpu.memory_space<vmem>>, %arg11: memref<1x128xf32, #tpu.memory_space<vmem>>, %arg12: memref<1x1x128xf32, #tpu.memory_space<vmem>>) attributes {dimension_semantics = [#tpu.dimension_semantics<parallel>], iteration_bounds = array<i64: 2>, scalar_prefetch = 0 : i64, scratch_operands = 0 : i64, tpu.core_type = #tpu.core_type<tc>, window_params = [{transform_indices = @transform_0, window_bounds = array<i64: 1, 32, 128>}, {pipeline_mode = #tpu.pipeline_mode<synchronous>, transform_indices = @transform_1, window_bounds = array<i64: 2, 640, 128>}, {pipeline_mode = #tpu.pipeline_mode<synchronous>, transform_indices = @transform_2, window_bounds = array<i64: 1, 128>}, {pipeline_mode = #tpu.pipeline_mode<synchronous>, transform_indices = @transform_3, window_bounds = array<i64: 2, 640, 128>}, {pipeline_mode = #tpu.pipeline_mode<synchronous>, transform_indices = @transform_4, window_bounds = array<i64: 1, 128>}, {pipeline_mode = #tpu.pipeline_mode<synchronous>, transform_indices = @transform_5, window_bounds = array<i64: 640, 128>}, {pipeline_mode = #tpu.pipeline_mode<synchronous>, transform_indices = @transform_6, window_bounds = array<i64: 1, 128>}, {pipeline_mode = #tpu.pipeline_mode<synchronous>, transform_indices = @transform_7, window_bounds = array<i64: 128, 128>}, {pipeline_mode = #tpu.pipeline_mode<synchronous>, transform_indices = @transform_8, window_bounds = array<i64: 1, 128>}, {pipeline_mode = #tpu.pipeline_mode<synchronous>, transform_indices = @transform_9, window_bounds = array<i64: 128, 128>}, {pipeline_mode = #tpu.pipeline_mode<synchronous>, transform_indices = @transform_10, window_bounds = array<i64: 1, 128>}, {transform_indices = @transform_11, window_bounds = array<i64: 1, 1, 128>}]} {
    %c0 = arith.constant 0 : index
    %c0_0 = arith.constant 0 : index
    %c0_1 = arith.constant 0 : index
    %0 = vector.load %arg1[%c0, %c0_0, %c0_1] : memref<1x32x128xf32, #tpu.memory_space<vmem>>, vector<1x32x128xf32>
    %1 = vector.shape_cast %0 : vector<1x32x128xf32> to vector<32x128xf32>
    %2 = vector.extract_strided_slice %1 {offsets = [0, 0], sizes = [28, 128], strides = [1, 1]} : vector<32x128xf32> to vector<28x128xf32>
    %3 = vector.extract_strided_slice %1 {offsets = [1, 0], sizes = [28, 128], strides = [1, 1]} : vector<32x128xf32> to vector<28x128xf32>
    %4 = vector.extract_strided_slice %1 {offsets = [2, 0], sizes = [28, 128], strides = [1, 1]} : vector<32x128xf32> to vector<28x128xf32>
    %5 = vector.extract_strided_slice %1 {offsets = [3, 0], sizes = [28, 128], strides = [1, 1]} : vector<32x128xf32> to vector<28x128xf32>
    %6 = vector.extract_strided_slice %1 {offsets = [4, 0], sizes = [28, 128], strides = [1, 1]} : vector<32x128xf32> to vector<28x128xf32>
    %7 = tpu.concatenate %2, %3, %4, %5, %6 in 1 : vector<28x128xf32>, vector<28x128xf32>, vector<28x128xf32>, vector<28x128xf32>, vector<28x128xf32> -> vector<28x640xf32>
    %8 = arith.truncf %7 : vector<28x640xf32> to vector<28x640xbf16>
    %c0_2 = arith.constant 0 : index
    %c0_3 = arith.constant 0 : index
    %c0_4 = arith.constant 0 : index
    %9 = vector.load %arg2[%c0_2, %c0_3, %c0_4] : memref<2x640x128xbf16, #tpu.memory_space<vmem>>, vector<1x640x128xbf16>
    %10 = vector.shape_cast %9 : vector<1x640x128xbf16> to vector<640x128xbf16>
    %cst = arith.constant dense<0.000000e+00> : vector<28x128xf32>
    %11 = tpu.matmul %8, %10, %cst {dimension_numbers = #tpu.dot_dimension_numbers<[1], [0], [0], [1], [0, 0, 1, 1], [], []>} : vector<28x640xbf16>, vector<640x128xbf16>, vector<28x128xf32> -> vector<28x128xf32>
    %c1 = arith.constant 1 : index
    %c0_5 = arith.constant 0 : index
    %c0_6 = arith.constant 0 : index
    %12 = vector.load %arg2[%c1, %c0_5, %c0_6] : memref<2x640x128xbf16, #tpu.memory_space<vmem>>, vector<1x640x128xbf16>
    %13 = vector.shape_cast %12 : vector<1x640x128xbf16> to vector<640x128xbf16>
    %cst_7 = arith.constant dense<0.000000e+00> : vector<28x128xf32>
    %14 = tpu.matmul %8, %13, %cst_7 {dimension_numbers = #tpu.dot_dimension_numbers<[1], [0], [0], [1], [0, 0, 1, 1], [], []>} : vector<28x640xbf16>, vector<640x128xbf16>, vector<28x128xf32> -> vector<28x128xf32>
    %15 = arith.maximumf %11, %14 : vector<28x128xf32>
    %16 = vector.extract_strided_slice %15 {offsets = [0, 0], sizes = [1, 128], strides = [1, 1]} : vector<28x128xf32> to vector<1x128xf32>
    %17 = vector.extract_strided_slice %15 {offsets = [1, 0], sizes = [1, 128], strides = [1, 1]} : vector<28x128xf32> to vector<1x128xf32>
    %18 = arith.maximumf %16, %17 : vector<1x128xf32>
    %19 = vector.extract_strided_slice %15 {offsets = [2, 0], sizes = [1, 128], strides = [1, 1]} : vector<28x128xf32> to vector<1x128xf32>
    %20 = vector.extract_strided_slice %15 {offsets = [3, 0], sizes = [1, 128], strides = [1, 1]} : vector<28x128xf32> to vector<1x128xf32>
    %21 = arith.maximumf %19, %20 : vector<1x128xf32>
    %22 = vector.extract_strided_slice %15 {offsets = [4, 0], sizes = [1, 128], strides = [1, 1]} : vector<28x128xf32> to vector<1x128xf32>
    %23 = vector.extract_strided_slice %15 {offsets = [5, 0], sizes = [1, 128], strides = [1, 1]} : vector<28x128xf32> to vector<1x128xf32>
    %24 = arith.maximumf %22, %23 : vector<1x128xf32>
    %25 = vector.extract_strided_slice %15 {offsets = [6, 0], sizes = [1, 128], strides = [1, 1]} : vector<28x128xf32> to vector<1x128xf32>
    %26 = vector.extract_strided_slice %15 {offsets = [7, 0], sizes = [1, 128], strides = [1, 1]} : vector<28x128xf32> to vector<1x128xf32>
    %27 = arith.maximumf %25, %26 : vector<1x128xf32>
    %28 = vector.extract_strided_slice %15 {offsets = [8, 0], sizes = [1, 128], strides = [1, 1]} : vector<28x128xf32> to vector<1x128xf32>
    %29 = vector.extract_strided_slice %15 {offsets = [9, 0], sizes = [1, 128], strides = [1, 1]} : vector<28x128xf32> to vector<1x128xf32>
    %30 = arith.maximumf %28, %29 : vector<1x128xf32>
    %31 = vector.extract_strided_slice %15 {offsets = [10, 0], sizes = [1, 128], strides = [1, 1]} : vector<28x128xf32> to vector<1x128xf32>
    %32 = vector.extract_strided_slice %15 {offsets = [11, 0], sizes = [1, 128], strides = [1, 1]} : vector<28x128xf32> to vector<1x128xf32>
    %33 = arith.maximumf %31, %32 : vector<1x128xf32>
    %34 = vector.extract_strided_slice %15 {offsets = [12, 0], sizes = [1, 128], strides = [1, 1]} : vector<28x128xf32> to vector<1x128xf32>
    %35 = vector.extract_strided_slice %15 {offsets = [13, 0], sizes = [1, 128], strides = [1, 1]} : vector<28x128xf32> to vector<1x128xf32>
    %36 = arith.maximumf %34, %35 : vector<1x128xf32>
    %37 = vector.extract_strided_slice %15 {offsets = [14, 0], sizes = [1, 128], strides = [1, 1]} : vector<28x128xf32> to vector<1x128xf32>
    %38 = vector.extract_strided_slice %15 {offsets = [15, 0], sizes = [1, 128], strides = [1, 1]} : vector<28x128xf32> to vector<1x128xf32>
    %39 = arith.maximumf %37, %38 : vector<1x128xf32>
    %40 = vector.extract_strided_slice %15 {offsets = [16, 0], sizes = [1, 128], strides = [1, 1]} : vector<28x128xf32> to vector<1x128xf32>
    %41 = vector.extract_strided_slice %15 {offsets = [17, 0], sizes = [1, 128], strides = [1, 1]} : vector<28x128xf32> to vector<1x128xf32>
    %42 = arith.maximumf %40, %41 : vector<1x128xf32>
    %43 = vector.extract_strided_slice %15 {offsets = [18, 0], sizes = [1, 128], strides = [1, 1]} : vector<28x128xf32> to vector<1x128xf32>
    %44 = vector.extract_strided_slice %15 {offsets = [19, 0], sizes = [1, 128], strides = [1, 1]} : vector<28x128xf32> to vector<1x128xf32>
    %45 = arith.maximumf %43, %44 : vector<1x128xf32>
    %46 = vector.extract_strided_slice %15 {offsets = [20, 0], sizes = [1, 128], strides = [1, 1]} : vector<28x128xf32> to vector<1x128xf32>
    %47 = vector.extract_strided_slice %15 {offsets = [21, 0], sizes = [1, 128], strides = [1, 1]} : vector<28x128xf32> to vector<1x128xf32>
    %48 = arith.maximumf %46, %47 : vector<1x128xf32>
    %49 = vector.extract_strided_slice %15 {offsets = [22, 0], sizes = [1, 128], strides = [1, 1]} : vector<28x128xf32> to vector<1x128xf32>
    %50 = vector.extract_strided_slice %15 {offsets = [23, 0], sizes = [1, 128], strides = [1, 1]} : vector<28x128xf32> to vector<1x128xf32>
    %51 = arith.maximumf %49, %50 : vector<1x128xf32>
    %52 = vector.extract_strided_slice %15 {offsets = [24, 0], sizes = [1, 128], strides = [1, 1]} : vector<28x128xf32> to vector<1x128xf32>
    %53 = vector.extract_strided_slice %15 {offsets = [25, 0], sizes = [1, 128], strides = [1, 1]} : vector<28x128xf32> to vector<1x128xf32>
    %54 = arith.maximumf %52, %53 : vector<1x128xf32>
    %55 = vector.extract_strided_slice %15 {offsets = [26, 0], sizes = [1, 128], strides = [1, 1]} : vector<28x128xf32> to vector<1x128xf32>
    %56 = vector.extract_strided_slice %15 {offsets = [27, 0], sizes = [1, 128], strides = [1, 1]} : vector<28x128xf32> to vector<1x128xf32>
    %57 = arith.maximumf %55, %56 : vector<1x128xf32>
    %58 = tpu.concatenate %18, %21, %24, %27, %30, %33, %36, %39, %42, %45, %48, %51, %54, %57 in 0 : vector<1x128xf32>, vector<1x128xf32>, vector<1x128xf32>, vector<1x128xf32>, vector<1x128xf32>, vector<1x128xf32>, vector<1x128xf32>, vector<1x128xf32>, vector<1x128xf32>, vector<1x128xf32>, vector<1x128xf32>, vector<1x128xf32>, vector<1x128xf32>, vector<1x128xf32> -> vector<14x128xf32>
    %c0_8 = arith.constant 0 : index
    %c0_9 = arith.constant 0 : index
    %59 = vector.load %arg3[%c0_8, %c0_9] : memref<1x128xf32, #tpu.memory_space<vmem>>, vector<1x128xf32>
    %60 = vector.broadcast %59 : vector<1x128xf32> to vector<14x128xf32>
    %61 = arith.addf %58, %60 : vector<14x128xf32>
    %cst_10 = arith.constant 0.000000e+00 : f32
    %62 = vector.broadcast %cst_10 : f32 to vector<14x128xf32>
    %63 = arith.maximumf %61, %62 : vector<14x128xf32>
    %64 = vector.extract_strided_slice %63 {offsets = [0, 0], sizes = [10, 128], strides = [1, 1]} : vector<14x128xf32> to vector<10x128xf32>
    %65 = vector.extract_strided_slice %63 {offsets = [1, 0], sizes = [10, 128], strides = [1, 1]} : vector<14x128xf32> to vector<10x128xf32>
    %66 = vector.extract_strided_slice %63 {offsets = [2, 0], sizes = [10, 128], strides = [1, 1]} : vector<14x128xf32> to vector<10x128xf32>
    %67 = vector.extract_strided_slice %63 {offsets = [3, 0], sizes = [10, 128], strides = [1, 1]} : vector<14x128xf32> to vector<10x128xf32>
    %68 = vector.extract_strided_slice %63 {offsets = [4, 0], sizes = [10, 128], strides = [1, 1]} : vector<14x128xf32> to vector<10x128xf32>
    %69 = tpu.concatenate %64, %65, %66, %67, %68 in 1 : vector<10x128xf32>, vector<10x128xf32>, vector<10x128xf32>, vector<10x128xf32>, vector<10x128xf32> -> vector<10x640xf32>
    %70 = arith.truncf %69 : vector<10x640xf32> to vector<10x640xbf16>
    %c0_11 = arith.constant 0 : index
    %c0_12 = arith.constant 0 : index
    %c0_13 = arith.constant 0 : index
    %71 = vector.load %arg4[%c0_11, %c0_12, %c0_13] : memref<2x640x128xbf16, #tpu.memory_space<vmem>>, vector<1x640x128xbf16>
    %72 = vector.shape_cast %71 : vector<1x640x128xbf16> to vector<640x128xbf16>
    %cst_14 = arith.constant dense<0.000000e+00> : vector<10x128xf32>
    %73 = tpu.matmul %70, %72, %cst_14 {dimension_numbers = #tpu.dot_dimension_numbers<[1], [0], [0], [1], [0, 0, 1, 1], [], []>} : vector<10x640xbf16>, vector<640x128xbf16>, vector<10x128xf32> -> vector<10x128xf32>
    %c1_15 = arith.constant 1 : index
    %c0_16 = arith.constant 0 : index
    %c0_17 = arith.constant 0 : index
    %74 = vector.load %arg4[%c1_15, %c0_16, %c0_17] : memref<2x640x128xbf16, #tpu.memory_space<vmem>>, vector<1x640x128xbf16>
    %75 = vector.shape_cast %74 : vector<1x640x128xbf16> to vector<640x128xbf16>
    %cst_18 = arith.constant dense<0.000000e+00> : vector<10x128xf32>
    %76 = tpu.matmul %70, %75, %cst_18 {dimension_numbers = #tpu.dot_dimension_numbers<[1], [0], [0], [1], [0, 0, 1, 1], [], []>} : vector<10x640xbf16>, vector<640x128xbf16>, vector<10x128xf32> -> vector<10x128xf32>
    %77 = arith.maximumf %73, %76 : vector<10x128xf32>
    %78 = vector.extract_strided_slice %77 {offsets = [0, 0], sizes = [1, 128], strides = [1, 1]} : vector<10x128xf32> to vector<1x128xf32>
    %79 = vector.extract_strided_slice %77 {offsets = [1, 0], sizes = [1, 128], strides = [1, 1]} : vector<10x128xf32> to vector<1x128xf32>
    %80 = arith.maximumf %78, %79 : vector<1x128xf32>
    %81 = vector.extract_strided_slice %77 {offsets = [2, 0], sizes = [1, 128], strides = [1, 1]} : vector<10x128xf32> to vector<1x128xf32>
    %82 = vector.extract_strided_slice %77 {offsets = [3, 0], sizes = [1, 128], strides = [1, 1]} : vector<10x128xf32> to vector<1x128xf32>
    %83 = arith.maximumf %81, %82 : vector<1x128xf32>
    %84 = vector.extract_strided_slice %77 {offsets = [4, 0], sizes = [1, 128], strides = [1, 1]} : vector<10x128xf32> to vector<1x128xf32>
    %85 = vector.extract_strided_slice %77 {offsets = [5, 0], sizes = [1, 128], strides = [1, 1]} : vector<10x128xf32> to vector<1x128xf32>
    %86 = arith.maximumf %84, %85 : vector<1x128xf32>
    %87 = vector.extract_strided_slice %77 {offsets = [6, 0], sizes = [1, 128], strides = [1, 1]} : vector<10x128xf32> to vector<1x128xf32>
    %88 = vector.extract_strided_slice %77 {offsets = [7, 0], sizes = [1, 128], strides = [1, 1]} : vector<10x128xf32> to vector<1x128xf32>
    %89 = arith.maximumf %87, %88 : vector<1x128xf32>
    %90 = vector.extract_strided_slice %77 {offsets = [8, 0], sizes = [1, 128], strides = [1, 1]} : vector<10x128xf32> to vector<1x128xf32>
    %91 = vector.extract_strided_slice %77 {offsets = [9, 0], sizes = [1, 128], strides = [1, 1]} : vector<10x128xf32> to vector<1x128xf32>
    %92 = arith.maximumf %90, %91 : vector<1x128xf32>
    %93 = tpu.concatenate %80, %83, %86, %89, %92 in 0 : vector<1x128xf32>, vector<1x128xf32>, vector<1x128xf32>, vector<1x128xf32>, vector<1x128xf32> -> vector<5x128xf32>
    %c0_19 = arith.constant 0 : index
    %c0_20 = arith.constant 0 : index
    %94 = vector.load %arg5[%c0_19, %c0_20] : memref<1x128xf32, #tpu.memory_space<vmem>>, vector<1x128xf32>
    %95 = vector.broadcast %94 : vector<1x128xf32> to vector<5x128xf32>
    %96 = arith.addf %93, %95 : vector<5x128xf32>
    %cst_21 = arith.constant 0.000000e+00 : f32
    %97 = vector.broadcast %cst_21 : f32 to vector<5x128xf32>
    %98 = arith.maximumf %96, %97 : vector<5x128xf32>
    %99 = vector.extract_strided_slice %98 {offsets = [0, 0], sizes = [1, 128], strides = [1, 1]} : vector<5x128xf32> to vector<1x128xf32>
    %100 = vector.extract_strided_slice %98 {offsets = [1, 0], sizes = [1, 128], strides = [1, 1]} : vector<5x128xf32> to vector<1x128xf32>
    %101 = vector.extract_strided_slice %98 {offsets = [2, 0], sizes = [1, 128], strides = [1, 1]} : vector<5x128xf32> to vector<1x128xf32>
    %102 = vector.extract_strided_slice %98 {offsets = [3, 0], sizes = [1, 128], strides = [1, 1]} : vector<5x128xf32> to vector<1x128xf32>
    %103 = vector.extract_strided_slice %98 {offsets = [4, 0], sizes = [1, 128], strides = [1, 1]} : vector<5x128xf32> to vector<1x128xf32>
    %104 = tpu.concatenate %99, %100, %101, %102, %103 in 1 : vector<1x128xf32>, vector<1x128xf32>, vector<1x128xf32>, vector<1x128xf32>, vector<1x128xf32> -> vector<1x640xf32>
    %105 = arith.truncf %104 : vector<1x640xf32> to vector<1x640xbf16>
    %c0_22 = arith.constant 0 : index
    %c0_23 = arith.constant 0 : index
    %106 = vector.load %arg6[%c0_22, %c0_23] : memref<640x128xbf16, #tpu.memory_space<vmem>>, vector<640x128xbf16>
    %cst_24 = arith.constant dense<0.000000e+00> : vector<1x128xf32>
    %107 = tpu.matmul %105, %106, %cst_24 {dimension_numbers = #tpu.dot_dimension_numbers<[1], [0], [0], [1], [0, 0, 1, 1], [], []>} : vector<1x640xbf16>, vector<640x128xbf16>, vector<1x128xf32> -> vector<1x128xf32>
    %c0_25 = arith.constant 0 : index
    %c0_26 = arith.constant 0 : index
    %108 = vector.load %arg7[%c0_25, %c0_26] : memref<1x128xf32, #tpu.memory_space<vmem>>, vector<1x128xf32>
    %109 = arith.addf %107, %108 : vector<1x128xf32>
    %cst_27 = arith.constant 0.000000e+00 : f32
    %110 = vector.broadcast %cst_27 : f32 to vector<1x128xf32>
    %111 = arith.maximumf %109, %110 : vector<1x128xf32>
    %112 = arith.truncf %111 : vector<1x128xf32> to vector<1x128xbf16>
    %c0_28 = arith.constant 0 : index
    %c0_29 = arith.constant 0 : index
    %113 = vector.load %arg8[%c0_28, %c0_29] : memref<128x128xbf16, #tpu.memory_space<vmem>>, vector<128x128xbf16>
    %cst_30 = arith.constant dense<0.000000e+00> : vector<1x128xf32>
    %114 = tpu.matmul %112, %113, %cst_30 {dimension_numbers = #tpu.dot_dimension_numbers<[1], [0], [0], [1], [0, 0, 1, 1], [], []>} : vector<1x128xbf16>, vector<128x128xbf16>, vector<1x128xf32> -> vector<1x128xf32>
    %c0_31 = arith.constant 0 : index
    %c0_32 = arith.constant 0 : index
    %115 = vector.load %arg9[%c0_31, %c0_32] : memref<1x128xf32, #tpu.memory_space<vmem>>, vector<1x128xf32>
    %116 = arith.addf %114, %115 : vector<1x128xf32>
    %cst_33 = arith.constant 0.000000e+00 : f32
    %117 = vector.broadcast %cst_33 : f32 to vector<1x128xf32>
    %118 = arith.maximumf %116, %117 : vector<1x128xf32>
    %119 = arith.truncf %118 : vector<1x128xf32> to vector<1x128xbf16>
    %c0_34 = arith.constant 0 : index
    %c0_35 = arith.constant 0 : index
    %120 = vector.load %arg10[%c0_34, %c0_35] : memref<128x128xbf16, #tpu.memory_space<vmem>>, vector<128x128xbf16>
    %cst_36 = arith.constant dense<0.000000e+00> : vector<1x128xf32>
    %121 = tpu.matmul %119, %120, %cst_36 {dimension_numbers = #tpu.dot_dimension_numbers<[1], [0], [0], [1], [0, 0, 1, 1], [], []>} : vector<1x128xbf16>, vector<128x128xbf16>, vector<1x128xf32> -> vector<1x128xf32>
    %c0_37 = arith.constant 0 : index
    %c0_38 = arith.constant 0 : index
    %122 = vector.load %arg11[%c0_37, %c0_38] : memref<1x128xf32, #tpu.memory_space<vmem>>, vector<1x128xf32>
    %123 = arith.addf %121, %122 : vector<1x128xf32>
    %124 = vector.shape_cast %123 : vector<1x128xf32> to vector<1x1x128xf32>
    %c0_39 = arith.constant 0 : index
    %c0_40 = arith.constant 0 : index
    %c0_41 = arith.constant 0 : index
    %125 = vector.load %arg12[%c0_39, %c0_40, %c0_41] : memref<1x1x128xf32, #tpu.memory_space<vmem>>, vector<1x1x128xf32>
    tpu.vector_store %arg12[%c0_39, %c0_40, %c0_41], %124 {strides = array<i32>} : memref<1x1x128xf32, #tpu.memory_space<vmem>>, vector<1x1x128xf32>,
    return
  }
  func.func @transform_0(%arg0: i32) -> (i32, i32, i32) {
    %c0_i32 = arith.constant 0 : i32
    %c0_i32_0 = arith.constant 0 : i32
    %c0_i32_1 = arith.constant 0 : i32
    return %arg0, %c0_i32, %c0_i32_0 : i32, i32, i32
  }
  func.func @transform_1(%arg0: i32) -> (i32, i32, i32) {
    %c0_i32 = arith.constant 0 : i32
    %c0_i32_0 = arith.constant 0 : i32
    %c0_i32_1 = arith.constant 0 : i32
    %c0_i32_2 = arith.constant 0 : i32
    return %c0_i32, %c0_i32_0, %c0_i32_1 : i32, i32, i32
  }
  func.func @transform_2(%arg0: i32) -> (i32, i32) {
    %c0_i32 = arith.constant 0 : i32
    %c0_i32_0 = arith.constant 0 : i32
    %c0_i32_1 = arith.constant 0 : i32
    return %c0_i32, %c0_i32_0 : i32, i32
  }
  func.func @transform_3(%arg0: i32) -> (i32, i32, i32) {
    %c0_i32 = arith.constant 0 : i32
    %c0_i32_0 = arith.constant 0 : i32
    %c0_i32_1 = arith.constant 0 : i32
    %c0_i32_2 = arith.constant 0 : i32
    return %c0_i32, %c0_i32_0, %c0_i32_1 : i32, i32, i32
  }
  func.func @transform_4(%arg0: i32) -> (i32, i32) {
    %c0_i32 = arith.constant 0 : i32
    %c0_i32_0 = arith.constant 0 : i32
    %c0_i32_1 = arith.constant 0 : i32
    return %c0_i32, %c0_i32_0 : i32, i32
  }
  func.func @transform_5(%arg0: i32) -> (i32, i32) {
    %c0_i32 = arith.constant 0 : i32
    %c0_i32_0 = arith.constant 0 : i32
    %c0_i32_1 = arith.constant 0 : i32
    return %c0_i32, %c0_i32_0 : i32, i32
  }
  func.func @transform_6(%arg0: i32) -> (i32, i32) {
    %c0_i32 = arith.constant 0 : i32
    %c0_i32_0 = arith.constant 0 : i32
    %c0_i32_1 = arith.constant 0 : i32
    return %c0_i32, %c0_i32_0 : i32, i32
  }
  func.func @transform_7(%arg0: i32) -> (i32, i32) {
    %c0_i32 = arith.constant 0 : i32
    %c0_i32_0 = arith.constant 0 : i32
    %c0_i32_1 = arith.constant 0 : i32
    return %c0_i32, %c0_i32_0 : i32, i32
  }
  func.func @transform_8(%arg0: i32) -> (i32, i32) {
    %c0_i32 = arith.constant 0 : i32
    %c0_i32_0 = arith.constant 0 : i32
    %c0_i32_1 = arith.constant 0 : i32
    return %c0_i32, %c0_i32_0 : i32, i32
  }
  func.func @transform_9(%arg0: i32) -> (i32, i32) {
    %c0_i32 = arith.constant 0 : i32
    %c0_i32_0 = arith.constant 0 : i32
    %c0_i32_1 = arith.constant 0 : i32
    return %c0_i32, %c0_i32_0 : i32, i32
  }
  func.func @transform_10(%arg0: i32) -> (i32, i32) {
    %c0_i32 = arith.constant 0 : i32
    %c0_i32_0 = arith.constant 0 : i32
    %c0_i32_1 = arith.constant 0 : i32
    return %c0_i32, %c0_i32_0 : i32, i32
  }
  func.func @transform_11(%arg0: i32) -> (i32, i32, i32) {
    %c0_i32 = arith.constant 0 : i32
    %c0_i32_0 = arith.constant 0 : i32
    %c0_i32_1 = arith.constant 0 : i32
    return %arg0, %c0_i32, %c0_i32_0 : i32, i32, i32
  }
}

</mosaic_0001>

<llo_original>
// kernel: net_forward.1
$region0: #{net_forward.1}
  #allocation0 [shape = 'u32[]', space=smem, size = 0x4, offset = 0x4, fixed_abs, tag = 'smem constant byte address 0x4 - core index']
  #allocation1 [shape = 'u32[144,128]{1,0:T(1,128)}', space=vmem, size = 0x12000, scoped, tag = 'internal scratch']
  %s0 = inlined_call_operand.vmem [shape: f32[2,32,128], index: 0, kind: input, shape index: {}]
  %s1 = inlined_call_operand.vmem [shape: bf16[2,640,128], index: 1, kind: input, shape index: {}]
  %s2 = inlined_call_operand.vmem [shape: f32[1,128], index: 2, kind: input, shape index: {}]
  %s3 = inlined_call_operand.hbm [shape: bf16[2,640,128], index: 3, kind: input, shape index: {}]
  %s4 = inlined_call_operand.vmem [shape: f32[1,128], index: 4, kind: input, shape index: {}]
  %s5 = inlined_call_operand.hbm [shape: bf16[640,128], index: 5, kind: input, shape index: {}]
  %s6 = inlined_call_operand.vmem [shape: f32[1,128], index: 6, kind: input, shape index: {}]
  %s7 = inlined_call_operand.vmem [shape: bf16[128,128], index: 7, kind: input, shape index: {}]
  %s8 = inlined_call_operand.vmem [shape: f32[1,128], index: 8, kind: input, shape index: {}]
  %s9 = inlined_call_operand.vmem [shape: bf16[128,128], index: 9, kind: input, shape index: {}]
  %s10 = inlined_call_operand.vmem [shape: f32[1,128], index: 10, kind: input, shape index: {}]
  %s11 = inlined_call_operand.hbm [shape: f32[2,1,128], index: 11, kind: output, shape index: {}]
  %s12 = sld [smem:[#allocation0]]
  $region85: #{net_forward.1} parent=0
    _
  %s14 = ssub.s32 1, %s12
  %s15 = scalar_select 0, %s14, %s12
  $region1: #{net_forward.1} parent=0
    #allocation2 [shape = 'u8[327680]{0}', space=vmem, size = 0x50000, scoped, tag = 'input window, operand 3, single buffered']
    #allocation3 [shape = 's32[2]{0}', space=sflag, size = 0x8, scoped, tag = 'scoped memory for net_forward.1']
    #allocation4 [shape = 's32[2]{0}', space=sflag, size = 0x8, scoped, tag = 'scoped memory for net_forward.1']
    #allocation5 [shape = 'u8[163840]{0}', space=vmem, size = 0x28000, scoped, tag = 'input window, operand 5, single buffered']
    #allocation6 [shape = 's32[1]{0}', space=sflag, size = 0x4, scoped, tag = 'scoped memory for net_forward.1']
    #allocation7 [shape = 'u8[1024]{0}', space=vmem, size = 0x400, scoped, tag = 'output window, operand 0']
    %16 = vsyncpa [#allocation3], 0
    %17 = vsyncpa [#allocation6], 0
    %18 = vsyncpa [#allocation4], 0
    %s19 = scalar_lea.sflag [#allocation4], 1
    %20 = vsyncpa %s19, 0
    loop: start=0, step=1, limit=4
    $region2: #{net_forward.1} parent=1 // loop_pre_header
      _
    $region3: #{net_forward.1} parent=1 // loop_header
      %s22 = sphi 0, %s26
      %p23 = scmp.ge.s32.totalorder %s22, 4
      %s32 = sphi 0, %s34
      %s35 = sphi 0, %s32
      %s36 = sphi 0, %s35
      %s52 = sphi 0, %s36
      %s56 = sphi 0, %s56
      %s58 = sphi 0, %s56
      %s59 = sphi 0, %s58
      %s73 = sphi 0, %s59
      %s77 = sphi 0, %s77
      %s79 = sphi 0, %s77
      %s80 = sphi 0, %s79
      %s94 = sphi 0, %s80
      %s98 = sphi 0, %s98
      %s100 = sphi 0, %s98
      %s101 = sphi 0, %s100
      %s115 = sphi 0, %s101
      %s119 = sphi 0, %s119
      %s121 = sphi 0, %s119
      %s122 = sphi 0, %s121
      %s136 = sphi 0, %s122
      %s140 = sphi 0, %s140
      %s142 = sphi 0, %s140
      %s143 = sphi 0, %s142
      %s157 = sphi 0, %s143
      %s161 = sphi 0, %s161
      %s163 = sphi 0, %s161
      %s164 = sphi 0, %s163
      %s178 = sphi 0, %s164
      %s182 = sphi 0, %s182
      %s184 = sphi 0, %s182
      %s185 = sphi 0, %s184
      %s199 = sphi 0, %s185
      %s203 = sphi 0, %s203
      %s205 = sphi 0, %s203
      %s206 = sphi 0, %s205
      %s220 = sphi 0, %s206
      %s224 = sphi 0, %s224
      %s226 = sphi 0, %s224
      %s227 = sphi 0, %s226
      %s241 = sphi 0, %s227
      %s245 = sphi 0, %s245
      %s247 = sphi 0, %s245
      %s248 = sphi 0, %s247
      %s262 = sphi 0, %s248
      %s268 = sphi 0, %s270
      %s271 = sphi 0, %s268
      %s272 = sphi 0, %s271
      %s288 = sphi 0, %s272
    $region4: #{net_forward.1} parent=1 // loop_header_branch
      %25 = sbr.rel (%p23) target = $region8
    $region5: #{net_forward.1} parent=1 // loop_body
      %s27 = ssub.s32 %s22, 1
      %s28 = ssub.s32 %s22, 2
      %s29 = sadd.s32 %s22, 1
      %s30 = ssub.s32 %s22, %s29
      %p31 = scmp.eq.s32.totalorder %s30, 0
      %s33 = sadd.s32 %s32, 1
      %s34 = scalar_select %p31, %s32, %s33
      %p37 = pneg %p31
      %p38 = scmp.eq.s32.totalorder %s22, 1
      %p39 = por %p37, %p38
      %p40 = scmp.ne.s32.totalorder %s32, %s35
      %p41 = scmp.eq.s32.totalorder %s22, 0
      %p42 = por %p40, %p41
      %p43 = scmp.ne.s32.totalorder %s32, %s35
      %p44 = scmp.eq.s32.totalorder %s27, 1
      %p45 = por %p43, %p44
      %p46 = scmp.ne.s32.totalorder %s35, %s36
      %p47 = scmp.eq.s32.totalorder %s27, 0
      %p48 = por %p46, %p47
      %p49 = scmp.ne.s32.totalorder %s35, %s36
      %p50 = scmp.eq.s32.totalorder %s28, 1
      %p51 = por %p49, %p50
      %p53 = scmp.ne.s32.totalorder %s36, %s52
      %p54 = scmp.eq.s32.totalorder %s28, 0
      %p55 = por %p53, %p54
      %s57 = sadd.s32 %s56, 1
      %p60 = scmp.eq.s32.totalorder %s22, 1
      %p61 = scmp.ne.s32.totalorder %s56, %s58
      %p62 = scmp.eq.s32.totalorder %s22, 0
      %p63 = por %p61, %p62
      %p64 = scmp.ne.s32.totalorder %s56, %s58
      %p65 = scmp.eq.s32.totalorder %s27, 1
      %p66 = por %p64, %p65
      %p67 = scmp.ne.s32.totalorder %s58, %s59
      %p68 = scmp.eq.s32.totalorder %s27, 0
      %p69 = por %p67, %p68
      %p70 = scmp.ne.s32.totalorder %s58, %s59
      %p71 = scmp.eq.s32.totalorder %s28, 1
      %p72 = por %p70, %p71
      %p74 = scmp.ne.s32.totalorder %s59, %s73
      %p75 = scmp.eq.s32.totalorder %s28, 0
      %p76 = por %p74, %p75
      %s78 = sadd.s32 %s77, 1
      %p81 = scmp.eq.s32.totalorder %s22, 1
      %p82 = scmp.ne.s32.totalorder %s77, %s79
      %p83 = scmp.eq.s32.totalorder %s22, 0
      %p84 = por %p82, %p83
      %p85 = scmp.ne.s32.totalorder %s77, %s79
      %p86 = scmp.eq.s32.totalorder %s27, 1
      %p87 = por %p85, %p86
      %p88 = scmp.ne.s32.totalorder %s79, %s80
      %p89 = scmp.eq.s32.totalorder %s27, 0
      %p90 = por %p88, %p89
      %p91 = scmp.ne.s32.totalorder %s79, %s80
      %p92 = scmp.eq.s32.totalorder %s28, 1
      %p93 = por %p91, %p92
      %p95 = scmp.ne.s32.totalorder %s80, %s94
      %p96 = scmp.eq.s32.totalorder %s28, 0
      %p97 = por %p95, %p96
      %s99 = sadd.s32 %s98, 1
      %p102 = scmp.eq.s32.totalorder %s22, 1
      %p103 = scmp.ne.s32.totalorder %s98, %s100
      %p104 = scmp.eq.s32.totalorder %s22, 0
      %p105 = por %p103, %p104
      %p106 = scmp.ne.s32.totalorder %s98, %s100
      %p107 = scmp.eq.s32.totalorder %s27, 1
      %p108 = por %p106, %p107
      %p109 = scmp.ne.s32.totalorder %s100, %s101
      %p110 = scmp.eq.s32.totalorder %s27, 0
      %p111 = por %p109, %p110
      %p112 = scmp.ne.s32.totalorder %s100, %s101
      %p113 = scmp.eq.s32.totalorder %s28, 1
      %p114 = por %p112, %p113
      %p116 = scmp.ne.s32.totalorder %s101, %s115
      %p117 = scmp.eq.s32.totalorder %s28, 0
      %p118 = por %p116, %p117
      %s120 = sadd.s32 %s119, 1
      %p123 = scmp.eq.s32.totalorder %s22, 1
      %p124 = scmp.ne.s32.totalorder %s119, %s121
      %p125 = scmp.eq.s32.totalorder %s22, 0
      %p126 = por %p124, %p125
      %p127 = scmp.ne.s32.totalorder %s119, %s121
      %p128 = scmp.eq.s32.totalorder %s27, 1
      %p129 = por %p127, %p128
      %p130 = scmp.ne.s32.totalorder %s121, %s122
      %p131 = scmp.eq.s32.totalorder %s27, 0
      %p132 = por %p130, %p131
      %p133 = scmp.ne.s32.totalorder %s121, %s122
      %p134 = scmp.eq.s32.totalorder %s28, 1
      %p135 = por %p133, %p134
      %p137 = scmp.ne.s32.totalorder %s122, %s136
      %p138 = scmp.eq.s32.totalorder %s28, 0
      %p139 = por %p137, %p138
      %s141 = sadd.s32 %s140, 1
      %p144 = scmp.eq.s32.totalorder %s22, 1
      %p145 = scmp.ne.s32.totalorder %s140, %s142
      %p146 = scmp.eq.s32.totalorder %s22, 0
      %p147 = por %p145, %p146
      %p148 = scmp.ne.s32.totalorder %s140, %s142
      %p149 = scmp.eq.s32.totalorder %s27, 1
      %p150 = por %p148, %p149
      %p151 = scmp.ne.s32.totalorder %s142, %s143
      %p152 = scmp.eq.s32.totalorder %s27, 0
      %p153 = por %p151, %p152
      %p154 = scmp.ne.s32.totalorder %s142, %s143
      %p155 = scmp.eq.s32.totalorder %s28, 1
      %p156 = por %p154, %p155
      %p158 = scmp.ne.s32.totalorder %s143, %s157
      %p159 = scmp.eq.s32.totalorder %s28, 0
      %p160 = por %p158, %p159
      %s162 = sadd.s32 %s161, 1
      %p165 = scmp.eq.s32.totalorder %s22, 1
      %p166 = scmp.ne.s32.totalorder %s161, %s163
      %p167 = scmp.eq.s32.totalorder %s22, 0
      %p168 = por %p166, %p167
      %p169 = scmp.ne.s32.totalorder %s161, %s163
      %p170 = scmp.eq.s32.totalorder %s27, 1
      %p171 = por %p169, %p170
      %p172 = scmp.ne.s32.totalorder %s163, %s164
      %p173 = scmp.eq.s32.totalorder %s27, 0
      %p174 = por %p172, %p173
      %p175 = scmp.ne.s32.totalorder %s163, %s164
      %p176 = scmp.eq.s32.totalorder %s28, 1
      %p177 = por %p175, %p176
      %p179 = scmp.ne.s32.totalorder %s164, %s178
      %p180 = scmp.eq.s32.totalorder %s28, 0
      %p181 = por %p179, %p180
      %s183 = sadd.s32 %s182, 1
      %p186 = scmp.eq.s32.totalorder %s22, 1
      %p187 = scmp.ne.s32.totalorder %s182, %s184
      %p188 = scmp.eq.s32.totalorder %s22, 0
      %p189 = por %p187, %p188
      %p190 = scmp.ne.s32.totalorder %s182, %s184
      %p191 = scmp.eq.s32.totalorder %s27, 1
      %p192 = por %p190, %p191
      %p193 = scmp.ne.s32.totalorder %s184, %s185
      %p194 = scmp.eq.s32.totalorder %s27, 0
      %p195 = por %p193, %p194
      %p196 = scmp.ne.s32.totalorder %s184, %s185
      %p197 = scmp.eq.s32.totalorder %s28, 1
      %p198 = por %p196, %p197
      %p200 = scmp.ne.s32.totalorder %s185, %s199
      %p201 = scmp.eq.s32.totalorder %s28, 0
      %p202 = por %p200, %p201
      %s204 = sadd.s32 %s203, 1
      %p207 = scmp.eq.s32.totalorder %s22, 1
      %p208 = scmp.ne.s32.totalorder %s203, %s205
      %p209 = scmp.eq.s32.totalorder %s22, 0
      %p210 = por %p208, %p209
      %p211 = scmp.ne.s32.totalorder %s203, %s205
      %p212 = scmp.eq.s32.totalorder %s27, 1
      %p213 = por %p211, %p212
      %p214 = scmp.ne.s32.totalorder %s205, %s206
      %p215 = scmp.eq.s32.totalorder %s27, 0
      %p216 = por %p214, %p215
      %p217 = scmp.ne.s32.totalorder %s205, %s206
      %p218 = scmp.eq.s32.totalorder %s28, 1
      %p219 = por %p217, %p218
      %p221 = scmp.ne.s32.totalorder %s206, %s220
      %p222 = scmp.eq.s32.totalorder %s28, 0
      %p223 = por %p221, %p222
      %s225 = sadd.s32 %s224, 1
      %p228 = scmp.eq.s32.totalorder %s22, 1
      %p229 = scmp.ne.s32.totalorder %s224, %s226
      %p230 = scmp.eq.s32.totalorder %s22, 0
      %p231 = por %p229, %p230
      %p232 = scmp.ne.s32.totalorder %s224, %s226
      %p233 = scmp.eq.s32.totalorder %s27, 1
      %p234 = por %p232, %p233
      %p235 = scmp.ne.s32.totalorder %s226, %s227
      %p236 = scmp.eq.s32.totalorder %s27, 0
      %p237 = por %p235, %p236
      %p238 = scmp.ne.s32.totalorder %s226, %s227
      %p239 = scmp.eq.s32.totalorder %s28, 1
      %p240 = por %p238, %p239
      %p242 = scmp.ne.s32.totalorder %s227, %s241
      %p243 = scmp.eq.s32.totalorder %s28, 0
      %p244 = por %p242, %p243
      %s246 = sadd.s32 %s245, 1
      %p249 = scmp.eq.s32.totalorder %s22, 1
      %p250 = scmp.ne.s32.totalorder %s245, %s247
      %p251 = scmp.eq.s32.totalorder %s22, 0
      %p252 = por %p250, %p251
      %p253 = scmp.ne.s32.totalorder %s245, %s247
      %p254 = scmp.eq.s32.totalorder %s27, 1
      %p255 = por %p253, %p254
      %p256 = scmp.ne.s32.totalorder %s247, %s248
      %p257 = scmp.eq.s32.totalorder %s27, 0
      %p258 = por %p256, %p257
      %p259 = scmp.ne.s32.totalorder %s247, %s248
      %p260 = scmp.eq.s32.totalorder %s28, 1
      %p261 = por %p259, %p260
      %p263 = scmp.ne.s32.totalorder %s248, %s262
      %p264 = scmp.eq.s32.totalorder %s28, 0
      %p265 = por %p263, %p264
      %s266 = ssub.s32 %s22, %s29
      %p267 = scmp.eq.s32.totalorder %s266, 0
      %s269 = sadd.s32 %s268, 1
      %s270 = scalar_select %p267, %s268, %s269
      %p273 = pneg %p267
      %p274 = scmp.eq.s32.totalorder %s22, 1
      %p275 = por %p273, %p274
      %p276 = scmp.ne.s32.totalorder %s268, %s271
      %p277 = scmp.eq.s32.totalorder %s22, 0
      %p278 = por %p276, %p277
      %p279 = scmp.ne.s32.totalorder %s268, %s271
      %p280 = scmp.eq.s32.totalorder %s27, 1
      %p281 = por %p279, %p280
      %p282 = scmp.ne.s32.totalorder %s271, %s272
      %p283 = scmp.eq.s32.totalorder %s27, 0
      %p284 = por %p282, %p283
      %p285 = scmp.ne.s32.totalorder %s271, %s272
      %p286 = scmp.eq.s32.totalorder %s28, 1
      %p287 = por %p285, %p286
      %p289 = scmp.ne.s32.totalorder %s272, %s288
      %p290 = scmp.eq.s32.totalorder %s28, 0
      %p291 = por %p289, %p290
      %p292 = scmp.le.s32.totalorder 1, %s22
      %p293 = scmp.lt.s32.totalorder %s22, 3
      %p294 = pnand %p292, %p293
      %p295 = pneg %p294
      // Predicated region
      $region9: #{net_forward.1} parent=5 // pred_check
        _
      $region10: #{net_forward.1} parent=5 // pred_check_branch
        %297 = sbr.rel (%p294) target = $region12
      $region11: #{net_forward.1} parent=5 // pred_region
        %s298 = ssub.s32 %s22, 1
        // Predicated region
        $region13: #{net_forward.1} parent=11 // pred_check
          %p299 = pneg %p69
        $region14: #{net_forward.1} parent=11 // pred_check_branch
          %301 = sbr.rel (%p299) target = $region16
        $region15: #{net_forward.1} parent=11 // pred_region
          _
        $region16: #{net_forward.1} parent=11 // pred_fallthru
          _
        // Predicated region
        $region17: #{net_forward.1} parent=11 // pred_check
          %p302 = pneg %p90
        $region18: #{net_forward.1} parent=11 // pred_check_branch
          %304 = sbr.rel (%p302) target = $region20
        $region19: #{net_forward.1} parent=11 // pred_region
          _
        $region20: #{net_forward.1} parent=11 // pred_fallthru
          _
        // Predicated region
        $region21: #{net_forward.1} parent=11 // pred_check
          %p305 = pneg %p111
        $region22: #{net_forward.1} parent=11 // pred_check_branch
          %307 = sbr.rel (%p305) target = $region24
        $region23: #{net_forward.1} parent=11 // pred_region
          %s309 = ssub.s32 10240, 10240
          %310 = vsyncadd [#allocation3], %s309
          %s311 = sshll.u32 [#allocation2], 4
          %s312 = int_to_ptr.vmem [resolvable:$true] %s311
          %317 = dma.hbm_to_vmem [thread:$0]  %s3, 10240, %s312, [#allocation3], 64, 64, 4
        $region24: #{net_forward.1} parent=11 // pred_fallthru
          _
        // Predicated region
        $region25: #{net_forward.1} parent=11 // pred_check
          %p318 = pneg %p132
        $region26: #{net_forward.1} parent=11 // pred_check_branch
          %320 = sbr.rel (%p318) target = $region28
        $region27: #{net_forward.1} parent=11 // pred_region
          _
        $region28: #{net_forward.1} parent=11 // pred_fallthru
          _
        // Predicated region
        $region29: #{net_forward.1} parent=11 // pred_check
          %p321 = pneg %p153
        $region30: #{net_forward.1} parent=11 // pred_check_branch
          %323 = sbr.rel (%p321) target = $region32
        $region31: #{net_forward.1} parent=11 // pred_region
          %s325 = ssub.s32 5120, 5120
          %326 = vsyncadd [#allocation6], %s325
          %s327 = sshll.u32 [#allocation5], 4
          %s328 = int_to_ptr.vmem [resolvable:$true] %s327
          %333 = dma.hbm_to_vmem [thread:$0]  %s5, 5120, %s328, [#allocation6], 64, 64, 4
        $region32: #{net_forward.1} parent=11 // pred_fallthru
          _
        // Predicated region
        $region33: #{net_forward.1} parent=11 // pred_check
          %p334 = pneg %p174
        $region34: #{net_forward.1} parent=11 // pred_check_branch
          %336 = sbr.rel (%p334) target = $region36
        $region35: #{net_forward.1} parent=11 // pred_region
          _
        $region36: #{net_forward.1} parent=11 // pred_fallthru
          _
        // Predicated region
        $region37: #{net_forward.1} parent=11 // pred_check
          %p337 = pneg %p195
        $region38: #{net_forward.1} parent=11 // pred_check_branch
          %339 = sbr.rel (%p337) target = $region40
        $region39: #{net_forward.1} parent=11 // pred_region
          _
        $region40: #{net_forward.1} parent=11 // pred_fallthru
          _
        // Predicated region
        $region41: #{net_forward.1} parent=11 // pred_check
          %p340 = pneg %p216
        $region42: #{net_forward.1} parent=11 // pred_check_branch
          %342 = sbr.rel (%p340) target = $region44
        $region43: #{net_forward.1} parent=11 // pred_region
          _
        $region44: #{net_forward.1} parent=11 // pred_fallthru
          _
        // Predicated region
        $region45: #{net_forward.1} parent=11 // pred_check
          %p343 = pneg %p237
        $region46: #{net_forward.1} parent=11 // pred_check_branch
          %345 = sbr.rel (%p343) target = $region48
        $region47: #{net_forward.1} parent=11 // pred_region
          _
        $region48: #{net_forward.1} parent=11 // pred_fallthru
          _
        // Predicated region
        $region49: #{net_forward.1} parent=11 // pred_check
          %p346 = pneg %p258
        $region50: #{net_forward.1} parent=11 // pred_check_branch
          %348 = sbr.rel (%p346) target = $region52
        $region51: #{net_forward.1} parent=11 // pred_region
          _
        $region52: #{net_forward.1} parent=11 // pred_fallthru
          _
      $region12: #{net_forward.1} parent=5 // pred_fallthru
        _
      %p349 = scmp.lt.s32.totalorder %s22, 2
      // Predicated region
      $region53: #{net_forward.1} parent=5 // pred_check
        %p350 = pneg %p349
      $region54: #{net_forward.1} parent=5 // pred_check_branch
        %352 = sbr.rel (%p350) target = $region56
      $region55: #{net_forward.1} parent=5 // pred_region
        // Predicated region
        $region57: #{net_forward.1} parent=55 // pred_check
          %p353 = pneg %p42
        $region58: #{net_forward.1} parent=55 // pred_check_branch
          %355 = sbr.rel (%p353) target = $region60
        $region59: #{net_forward.1} parent=55 // pred_region
          %p356 = scmp.lt.s32.totalorder %s22, 1
          %s357 = scalar_select %p356, %s22, 1
          %s358 = smul.addr %s357, 4
          %s359 = smul.addr %s358, 8
          %s360 = scalar_lea.vmem %s0, %s359
        $region60: #{net_forward.1} parent=55 // pred_fallthru
          _
      $region56: #{net_forward.1} parent=5 // pred_fallthru
        _
      %p361 = scmp.le.s32.totalorder 1, %s22
      %p362 = scmp.lt.s32.totalorder %s22, 3
      %p363 = pnand %p361, %p362
      %p364 = pneg %p363
      // Predicated region
      $region61: #{net_forward.1} parent=5 // pred_check
        _
      $region62: #{net_forward.1} parent=5 // pred_check_branch
        %366 = sbr.rel (%p363) target = $region64
      $region63: #{net_forward.1} parent=5 // pred_region
        %s367 = ssub.s32 %s22, 1
        // Predicated region
        $region65: #{net_forward.1} parent=63 // pred_check
          %p368 = pneg %p111
        $region66: #{net_forward.1} parent=63 // pred_check_branch
          %370 = sbr.rel (%p368) target = $region68
        $region67: #{net_forward.1} parent=63 // pred_region
          %371 = dma.done [#allocation3], 10240
        $region68: #{net_forward.1} parent=63 // pred_fallthru
          _
        // Predicated region
        $region69: #{net_forward.1} parent=63 // pred_check
          %p372 = pneg %p153
        $region70: #{net_forward.1} parent=63 // pred_check_branch
          %374 = sbr.rel (%p372) target = $region72
        $region71: #{net_forward.1} parent=63 // pred_region
          %375 = dma.done [#allocation6], 5120
        $region72: #{net_forward.1} parent=63 // pred_fallthru
          _
        %p376 = scmp.lt.s32.totalorder %s27, 1
        %s377 = scalar_select %p376, %s27, 1
        %s378 = smul.addr %s377, 4
        %s379 = smul.addr %s378, 8
        %s380 = scalar_lea.vmem %s0, %s379
        %p381 = pneg %p48
        %p382 = pneg %p45
        %p383 = pneg %p69
        %p384 = pneg %p66
        %p385 = pneg %p90
        %p386 = pneg %p87
        %p387 = pneg %p111
        %p388 = pneg %p108
        %p389 = pneg %p132
        %p390 = pneg %p129
        %p391 = pneg %p153
        %p392 = pneg %p150
        %p393 = pneg %p174
        %p394 = pneg %p171
        %p395 = pneg %p195
        %p396 = pneg %p192
        %p397 = pneg %p216
        %p398 = pneg %p213
        %p399 = pneg %p237
        %p400 = pneg %p234
        %p401 = pneg %p258
        %p402 = pneg %p255
        %p403 = pneg %p284
        %p404 = pneg %p281
        %s405 = sand.u32 %s271, 1
        %s406 = scalar_lea.sflag [#allocation4], %s405
        %s407 = sand.u32 %s271, 1
        %s408 = scalar_lea.vmem [#allocation7], %s407
        %p409 = scmp.lt.s32.totalorder %s27, 1
        %s410 = scalar_select %p409, %s27, 1
        %s411 = smul.addr %s410, 4
        %s412 = smul.addr %s411, 8
        %s413 = scalar_lea.vmem %s0, %s412
        %v415 = vld [vmem:[%s413] sm:$0xff]
        %v416 = vld [vmem:[%s413 + $0x8] sm:$0xff]
        %v417 = vld [vmem:[%s413 + $0x10] sm:$0xff]
        %v418 = vld [vmem:[%s413 + $0x18] sm:$0xff]
        %vm423 = vcmask 1046528
        %v424 = vrot.slane %v415, 1
        %v425 = vrot.slane %v416, 1
        %v426 = vsel %vm423, %v424, %v425
        %v427 = vrot.slane %v417, 1
        %v428 = vsel %vm423, %v425, %v427
        %v429 = vrot.slane %v418, 1
        %v430 = vsel %vm423, %v427, %v429
        %vm435 = vcmask 1045504
        %v436 = vrot.slane %v415, 2
        %v437 = vrot.slane %v416, 2
        %v438 = vsel %vm435, %v436, %v437
        %v439 = vrot.slane %v417, 2
        %v440 = vsel %vm435, %v437, %v439
        %v441 = vrot.slane %v418, 2
        %v442 = vsel %vm435, %v439, %v441
        %vm447 = vcmask 1044480
        %v448 = vrot.slane %v415, 3
        %v449 = vrot.slane %v416, 3
        %v450 = vsel %vm447, %v448, %v449
        %v451 = vrot.slane %v417, 3
        %v452 = vsel %vm447, %v449, %v451
        %v453 = vrot.slane %v418, 3
        %v454 = vsel %vm447, %v451, %v453
        %vm459 = vcmask 1043456
        %v460 = vrot.slane %v415, 4
        %v461 = vrot.slane %v416, 4
        %v462 = vsel %vm459, %v460, %v461
        %v463 = vrot.slane %v417, 4
        %v464 = vsel %vm459, %v461, %v463
        %v465 = vrot.slane %v418, 4
        %v466 = vsel %vm459, %v463, %v465
        %v471 = vpack.c.bf16 %v416, %v415
        %v472 = vpack.c.bf16 %v428, %v426
        %v473 = vpack.c.bf16 %v440, %v438
        %v474 = vpack.c.bf16 %v452, %v450
        %v475 = vpack.c.bf16 %v464, %v462
        %v476 = vpack.c.bf16 %v418, %v417
        %v477 = vpack.c.bf16 %v429, %v430
        %v478 = vpack.c.bf16 %v441, %v442
        %v479 = vpack.c.bf16 %v453, %v454
        %v480 = vpack.c.bf16 %v465, %v466
        %v481 = vld [vmem:[%s1] sm:$0xf]
        %v482 = vld [vmem:[%s1 + $0x4] sm:$0xf]
        %v483 = vld [vmem:[%s1 + $0x8] sm:$0xf]
        %v484 = vld [vmem:[%s1 + $0xc] sm:$0xf]
        %v485 = vld [vmem:[%s1 + $0x10] sm:$0xf]
        %v486 = vld [vmem:[%s1 + $0x14] sm:$0xf]
        %v487 = vld [vmem:[%s1 + $0x18] sm:$0xf]
        %v488 = vld [vmem:[%s1 + $0x1c] sm:$0xf]
        %v489 = vld [vmem:[%s1 + $0x20] sm:$0xf]
        %v490 = vld [vmem:[%s1 + $0x24] sm:$0xf]
        %v491 = vld [vmem:[%s1 + $0x28] sm:$0xf]
        %v492 = vld [vmem:[%s1 + $0x2c] sm:$0xf]
        %v493 = vld [vmem:[%s1 + $0x30] sm:$0xf]
        %v494 = vld [vmem:[%s1 + $0x34] sm:$0xf]
        %v495 = vld [vmem:[%s1 + $0x38] sm:$0xf]
        %v496 = vld [vmem:[%s1 + $0x3c] sm:$0xf]
        %v497 = vld [vmem:[%s1 + $0x40] sm:$0xf]
        %v498 = vld [vmem:[%s1 + $0x44] sm:$0xf]
        %v499 = vld [vmem:[%s1 + $0x48] sm:$0xf]
        %v500 = vld [vmem:[%s1 + $0x4c] sm:$0xf]
        %v501 = vld [vmem:[%s1 + $0x50] sm:$0xf]
        %v502 = vld [vmem:[%s1 + $0x54] sm:$0xf]
        %v503 = vld [vmem:[%s1 + $0x58] sm:$0xf]
        %v504 = vld [vmem:[%s1 + $0x5c] sm:$0xf]
        %v505 = vld [vmem:[%s1 + $0x60] sm:$0xf]
        %v506 = vld [vmem:[%s1 + $0x64] sm:$0xf]
        %v507 = vld [vmem:[%s1 + $0x68] sm:$0xf]
        %v508 = vld [vmem:[%s1 + $0x6c] sm:$0xf]
        %v509 = vld [vmem:[%s1 + $0x70] sm:$0xf]
        %v510 = vld [vmem:[%s1 + $0x74] sm:$0xf]
        %v511 = vld [vmem:[%s1 + $0x78] sm:$0xf]
        %v512 = vld [vmem:[%s1 + $0x7c] sm:$0xf]
        %v513 = vld [vmem:[%s1 + $0x80] sm:$0xf]
        %v514 = vld [vmem:[%s1 + $0x84] sm:$0xf]
        %v515 = vld [vmem:[%s1 + $0x88] sm:$0xf]
        %v516 = vld [vmem:[%s1 + $0x8c] sm:$0xf]
        %v517 = vld [vmem:[%s1 + $0x90] sm:$0xf]
        %v518 = vld [vmem:[%s1 + $0x94] sm:$0xf]
        %v519 = vld [vmem:[%s1 + $0x98] sm:$0xf]
        %v520 = vld [vmem:[%s1 + $0x9c] sm:$0xf]
        %v521 = vld [vmem:[%s1 + $0xa0] sm:$0xf]
        %v522 = vld [vmem:[%s1 + $0xa4] sm:$0xf]
        %v523 = vld [vmem:[%s1 + $0xa8] sm:$0xf]
        %v524 = vld [vmem:[%s1 + $0xac] sm:$0xf]
        %v525 = vld [vmem:[%s1 + $0xb0] sm:$0xf]
        %v526 = vld [vmem:[%s1 + $0xb4] sm:$0xf]
        %v527 = vld [vmem:[%s1 + $0xb8] sm:$0xf]
        %v528 = vld [vmem:[%s1 + $0xbc] sm:$0xf]
        %v529 = vld [vmem:[%s1 + $0xc0] sm:$0xf]
        %v530 = vld [vmem:[%s1 + $0xc4] sm:$0xf]
        %v531 = vld [vmem:[%s1 + $0xc8] sm:$0xf]
        %v532 = vld [vmem:[%s1 + $0xcc] sm:$0xf]
        %v533 = vld [vmem:[%s1 + $0xd0] sm:$0xf]
        %v534 = vld [vmem:[%s1 + $0xd4] sm:$0xf]
        %v535 = vld [vmem:[%s1 + $0xd8] sm:$0xf]
        %v536 = vld [vmem:[%s1 + $0xdc] sm:$0xf]
        %v537 = vld [vmem:[%s1 + $0xe0] sm:$0xf]
        %v538 = vld [vmem:[%s1 + $0xe4] sm:$0xf]
        %v539 = vld [vmem:[%s1 + $0xe8] sm:$0xf]
        %v540 = vld [vmem:[%s1 + $0xec] sm:$0xf]
        %v541 = vld [vmem:[%s1 + $0xf0] sm:$0xf]
        %v542 = vld [vmem:[%s1 + $0xf4] sm:$0xf]
        %v543 = vld [vmem:[%s1 + $0xf8] sm:$0xf]
        %v544 = vld [vmem:[%s1 + $0xfc] sm:$0xf]
        %v545 = vld [vmem:[%s1 + $0x100] sm:$0xf]
        %v546 = vld [vmem:[%s1 + $0x104] sm:$0xf]
        %v547 = vld [vmem:[%s1 + $0x108] sm:$0xf]
        %v548 = vld [vmem:[%s1 + $0x10c] sm:$0xf]
        %v549 = vld [vmem:[%s1 + $0x110] sm:$0xf]
        %v550 = vld [vmem:[%s1 + $0x114] sm:$0xf]
        %v551 = vld [vmem:[%s1 + $0x118] sm:$0xf]
        %v552 = vld [vmem:[%s1 + $0x11c] sm:$0xf]
        %v553 = vld [vmem:[%s1 + $0x120] sm:$0xf]
        %v554 = vld [vmem:[%s1 + $0x124] sm:$0xf]
        %v555 = vld [vmem:[%s1 + $0x128] sm:$0xf]
        %v556 = vld [vmem:[%s1 + $0x12c] sm:$0xf]
        %v557 = vld [vmem:[%s1 + $0x130] sm:$0xf]
        %v558 = vld [vmem:[%s1 + $0x134] sm:$0xf]
        %v559 = vld [vmem:[%s1 + $0x138] sm:$0xf]
        %v560 = vld [vmem:[%s1 + $0x13c] sm:$0xf]
        %v641 = vunpack.c.l.b16 %v481
        %v642 = vunpack.c.l.b16 %v482
        %v643 = vunpack.c.l.b16 %v483
        %v644 = vunpack.c.l.b16 %v484
        %v645 = vunpack.c.l.b16 %v485
        %v646 = vunpack.c.l.b16 %v486
        %v647 = vunpack.c.l.b16 %v487
        %v648 = vunpack.c.l.b16 %v488
        %v649 = vunpack.c.l.b16 %v489
        %v650 = vunpack.c.l.b16 %v490
        %v651 = vunpack.c.l.b16 %v491
        %v652 = vunpack.c.l.b16 %v492
        %v653 = vunpack.c.l.b16 %v493
        %v654 = vunpack.c.l.b16 %v494
        %v655 = vunpack.c.l.b16 %v495
        %v656 = vunpack.c.l.b16 %v496
        %v657 = vunpack.c.l.b16 %v497
        %v658 = vunpack.c.l.b16 %v498
        %v659 = vunpack.c.l.b16 %v499
        %v660 = vunpack.c.l.b16 %v500
        %v661 = vunpack.c.l.b16 %v501
        %v662 = vunpack.c.l.b16 %v502
        %v663 = vunpack.c.l.b16 %v503
        %v664 = vunpack.c.l.b16 %v504
        %v665 = vunpack.c.l.b16 %v505
        %v666 = vunpack.c.l.b16 %v506
        %v667 = vunpack.c.l.b16 %v507
        %v668 = vunpack.c.l.b16 %v508
        %v669 = vunpack.c.l.b16 %v509
        %v670 = vunpack.c.l.b16 %v510
        %v671 = vunpack.c.l.b16 %v511
        %v672 = vunpack.c.l.b16 %v512
        %v673 = vunpack.c.l.b16 %v513
        %v674 = vunpack.c.l.b16 %v514
        %v675 = vunpack.c.l.b16 %v515
        %v676 = vunpack.c.l.b16 %v516
        %v677 = vunpack.c.l.b16 %v517
        %v678 = vunpack.c.l.b16 %v518
        %v679 = vunpack.c.l.b16 %v519
        %v680 = vunpack.c.l.b16 %v520
        %v681 = vunpack.c.l.b16 %v521
        %v682 = vunpack.c.l.b16 %v522
        %v683 = vunpack.c.l.b16 %v523
        %v684 = vunpack.c.l.b16 %v524
        %v685 = vunpack.c.l.b16 %v525
        %v686 = vunpack.c.l.b16 %v526
        %v687 = vunpack.c.l.b16 %v527
        %v688 = vunpack.c.l.b16 %v528
        %v689 = vunpack.c.l.b16 %v529
        %v690 = vunpack.c.l.b16 %v530
        %v691 = vunpack.c.l.b16 %v531
        %v692 = vunpack.c.l.b16 %v532
        %v693 = vunpack.c.l.b16 %v533
        %v694 = vunpack.c.l.b16 %v534
        %v695 = vunpack.c.l.b16 %v535
        %v696 = vunpack.c.l.b16 %v536
        %v697 = vunpack.c.l.b16 %v537
        %v698 = vunpack.c.l.b16 %v538
        %v699 = vunpack.c.l.b16 %v539
        %v700 = vunpack.c.l.b16 %v540
        %v701 = vunpack.c.l.b16 %v541
        %v702 = vunpack.c.l.b16 %v542
        %v703 = vunpack.c.l.b16 %v543
        %v704 = vunpack.c.l.b16 %v544
        %v705 = vunpack.c.l.b16 %v545
        %v706 = vunpack.c.l.b16 %v546
        %v707 = vunpack.c.l.b16 %v547
        %v708 = vunpack.c.l.b16 %v548
        %v709 = vunpack.c.l.b16 %v549
        %v710 = vunpack.c.l.b16 %v550
        %v711 = vunpack.c.l.b16 %v551
        %v712 = vunpack.c.l.b16 %v552
        %v713 = vunpack.c.l.b16 %v553
        %v714 = vunpack.c.l.b16 %v554
        %v715 = vunpack.c.l.b16 %v555
        %v716 = vunpack.c.l.b16 %v556
        %v717 = vunpack.c.l.b16 %v557
        %v718 = vunpack.c.l.b16 %v558
        %v719 = vunpack.c.l.b16 %v559
        %v720 = vunpack.c.l.b16 %v560
        %v721 = vpack.c.b16 %v642, %v641
        %v722 = vpack.c.b16 %v644, %v643
        %v723 = vpack.c.b16 %v646, %v645
        %v724 = vpack.c.b16 %v648, %v647
        %v725 = vpack.c.b16 %v650, %v649
        %v726 = vpack.c.b16 %v652, %v651
        %v727 = vpack.c.b16 %v654, %v653
        %v728 = vpack.c.b16 %v656, %v655
        %v729 = vpack.c.b16 %v658, %v657
        %v730 = vpack.c.b16 %v660, %v659
        %v731 = vpack.c.b16 %v662, %v661
        %v732 = vpack.c.b16 %v664, %v663
        %v733 = vpack.c.b16 %v666, %v665
        %v734 = vpack.c.b16 %v668, %v667
        %v735 = vpack.c.b16 %v670, %v669
        %v736 = vpack.c.b16 %v672, %v671
        %v737 = vpack.c.b16 %v674, %v673
        %v738 = vpack.c.b16 %v676, %v675
        %v739 = vpack.c.b16 %v678, %v677
        %v740 = vpack.c.b16 %v680, %v679
        %v741 = vpack.c.b16 %v682, %v681
        %v742 = vpack.c.b16 %v684, %v683
        %v743 = vpack.c.b16 %v686, %v685
        %v744 = vpack.c.b16 %v688, %v687
        %v745 = vpack.c.b16 %v690, %v689
        %v746 = vpack.c.b16 %v692, %v691
        %v747 = vpack.c.b16 %v694, %v693
        %v748 = vpack.c.b16 %v696, %v695
        %v749 = vpack.c.b16 %v698, %v697
        %v750 = vpack.c.b16 %v700, %v699
        %v751 = vpack.c.b16 %v702, %v701
        %v752 = vpack.c.b16 %v704, %v703
        %v753 = vpack.c.b16 %v706, %v705
        %v754 = vpack.c.b16 %v708, %v707
        %v755 = vpack.c.b16 %v710, %v709
        %v756 = vpack.c.b16 %v712, %v711
        %v757 = vpack.c.b16 %v714, %v713
        %v758 = vpack.c.b16 %v716, %v715
        %v759 = vpack.c.b16 %v718, %v717
        %v760 = vpack.c.b16 %v720, %v719
        %801 = vmatprep.subr.bf16.mxu0 0
        %802 = vmatpush1.bf16.msra.mxu0 %v721
        %803 = vmatprep.subr.bf16.mxu0 0
        %804 = vmatpush1.bf16.msra.mxu0 %v722
        %805 = vmatprep.subr.bf16.mxu0 0
        %806 = vmatpush1.bf16.msra.mxu0 %v723
        %807 = vmatprep.subr.bf16.mxu0 0
        %808 = vmatpush1.bf16.msra.mxu0 %v724
        %809 = vmatprep.subr.bf16.mxu0 0
        %810 = vmatpush1.bf16.msra.mxu0 %v725
        %811 = vmatprep.subr.bf16.mxu0 0
        %812 = vmatpush1.bf16.msra.mxu0 %v726
        %813 = vmatprep.subr.bf16.mxu0 0
        %814 = vmatpush1.bf16.msra.mxu0 %v727
        %815 = vmatprep.subr.bf16.mxu0 0
        %816 = vmatpush1.bf16.msra.mxu0 %v728
        %817 = vmatprep.subr.bf16.mxu0 0
        %818 = vmatpush1.bf16.msra.mxu0 %v729
        %819 = vmatprep.subr.bf16.mxu0 0
        %820 = vmatpush1.bf16.msra.mxu0 %v730
        %821 = vmatprep.subr.bf16.mxu0 0
        %822 = vmatpush1.bf16.msra.mxu0 %v731
        %823 = vmatprep.subr.bf16.mxu0 0
        %824 = vmatpush1.bf16.msra.mxu0 %v732
        %825 = vmatprep.subr.bf16.mxu0 0
        %826 = vmatpush1.bf16.msra.mxu0 %v733
        %827 = vmatprep.subr.bf16.mxu0 0
        %828 = vmatpush1.bf16.msra.mxu0 %v734
        %829 = vmatprep.subr.bf16.mxu0 0
        %830 = vmatpush1.bf16.msra.mxu0 %v735
        %831 = vmatprep.subr.bf16.mxu0 0
        %832 = vmatpush1.bf16.msra.mxu0 %v736
        %833 = vmatprep.mubr.bf16.mxu0 %v472
        %834 = vmatmul.mubr.bf16.gmra.mrb[0].mxu0 %v471
        %v835 = vpop.f32.mrb[0].mxu0
        %v836 = vadd.f32 0.0, %v835
        %v837 = vpop.f32.mrb[0].mxu0
        %v838 = vpop.f32.mrb[0].mxu0
        %v839 = vadd.f32 0.0, %v838
        %v840 = vpop.f32.mrb[0].mxu0
        %841 = vmatprep.mubr.bf16.mxu0 %v477
        %842 = vmatmul.mubr.bf16.gmra.mrb[0].mxu0 %v476
        %v843 = vpop.f32.mrb[0].mxu0
        %v844 = vadd.f32 0.0, %v843
        %v845 = vpop.f32.mrb[0].mxu0
        %v846 = vpop.f32.mrb[0].mxu0
        %v847 = vadd.f32 0.0, %v846
        %v848 = vpop.f32.mrb[0].mxu0
        %849 = vdwg.mxu0
        %850 = vmatprep.subr.bf16.mxu0 0
        %851 = vmatpush1.bf16.msra.mxu0 %v737
        %852 = vmatprep.subr.bf16.mxu0 0
        %853 = vmatpush1.bf16.msra.mxu0 %v738
        %854 = vmatprep.subr.bf16.mxu0 0
        %855 = vmatpush1.bf16.msra.mxu0 %v739
        %856 = vmatprep.subr.bf16.mxu0 0
        %857 = vmatpush1.bf16.msra.mxu0 %v740
        %858 = vmatprep.subr.bf16.mxu0 0
        %859 = vmatpush1.bf16.msra.mxu0 %v741
        %860 = vmatprep.subr.bf16.mxu0 0
        %861 = vmatpush1.bf16.msra.mxu0 %v742
        %862 = vmatprep.subr.bf16.mxu0 0
        %863 = vmatpush1.bf16.msra.mxu0 %v743
        %864 = vmatprep.subr.bf16.mxu0 0
        %865 = vmatpush1.bf16.msra.mxu0 %v744
        %866 = vmatprep.subr.bf16.mxu0 0
        %867 = vmatpush1.bf16.msra.mxu0 %v745
        %868 = vmatprep.subr.bf16.mxu0 0
        %869 = vmatpush1.bf16.msra.mxu0 %v746
        %870 = vmatprep.subr.bf16.mxu0 0
        %871 = vmatpush1.bf16.msra.mxu0 %v747
        %872 = vmatprep.subr.bf16.mxu0 0
        %873 = vmatpush1.bf16.msra.mxu0 %v748
        %874 = vmatprep.subr.bf16.mxu0 0
        %875 = vmatpush1.bf16.msra.mxu0 %v749
        %876 = vmatprep.subr.bf16.mxu0 0
        %877 = vmatpush1.bf16.msra.mxu0 %v750
        %878 = vmatprep.subr.bf16.mxu0 0
        %879 = vmatpush1.bf16.msra.mxu0 %v751
        %880 = vmatprep.subr.bf16.mxu0 0
        %881 = vmatpush1.bf16.msra.mxu0 %v752
        %882 = vmatprep.mubr.bf16.mxu0 %v474
        %883 = vmatmul.mubr.bf16.gmra.mrb[0].mxu0 %v473
        %v884 = vpop.f32.mrb[0].mxu0
        %v885 = vadd.f32 %v836, %v884
        %v886 = vpop.f32.mrb[0].mxu0
        %v887 = vpop.f32.mrb[0].mxu0
        %v888 = vadd.f32 %v839, %v887
        %v889 = vpop.f32.mrb[0].mxu0
        %890 = vmatprep.mubr.bf16.mxu0 %v479
        %891 = vmatmul.mubr.bf16.gmra.mrb[0].mxu0 %v478
        %v892 = vpop.f32.mrb[0].mxu0
        %v893 = vadd.f32 %v844, %v892
        %v894 = vpop.f32.mrb[0].mxu0
        %v895 = vpop.f32.mrb[0].mxu0
        %v896 = vadd.f32 %v847, %v895
        %v897 = vpop.f32.mrb[0].mxu0
        %898 = vdwg.mxu0
        %899 = vmatprep.subr.bf16.mxu0 0
        %900 = vmatpush1.bf16.msra.mxu0 %v753
        %901 = vmatprep.subr.bf16.mxu0 0
        %902 = vmatpush1.bf16.msra.mxu0 %v754
        %903 = vmatprep.subr.bf16.mxu0 0
        %904 = vmatpush1.bf16.msra.mxu0 %v755
        %905 = vmatprep.subr.bf16.mxu0 0
        %906 = vmatpush1.bf16.msra.mxu0 %v756
        %907 = vmatprep.subr.bf16.mxu0 0
        %908 = vmatpush1.bf16.msra.mxu0 %v757
        %909 = vmatprep.subr.bf16.mxu0 0
        %910 = vmatpush1.bf16.msra.mxu0 %v758
        %911 = vmatprep.subr.bf16.mxu0 0
        %912 = vmatpush1.bf16.msra.mxu0 %v759
        %913 = vmatprep.subr.bf16.mxu0 0
        %914 = vmatpush1.bf16.msra.mxu0 %v760
        %915 = vmatprep.subr.bf16.mxu0 0
        %916 = vmatpush1.bf16.msra.mxu0 0
        %917 = vmatprep.subr.bf16.mxu0 0
        %918 = vmatpush1.bf16.msra.mxu0 0
        %919 = vmatprep.subr.bf16.mxu0 0
        %920 = vmatpush1.bf16.msra.mxu0 0
        %921 = vmatprep.subr.bf16.mxu0 0
        %922 = vmatpush1.bf16.msra.mxu0 0
        %923 = vmatprep.subr.bf16.mxu0 0
        %924 = vmatpush1.bf16.msra.mxu0 0
        %925 = vmatprep.subr.bf16.mxu0 0
        %926 = vmatpush1.bf16.msra.mxu0 0
        %927 = vmatprep.subr.bf16.mxu0 0
        %928 = vmatpush1.bf16.msra.mxu0 0
        %929 = vmatprep.subr.bf16.mxu0 0
        %930 = vmatpush1.bf16.msra.mxu0 0
        %931 = vmatprep.mubr.bf16.mxu0 0
        %932 = vmatmul.mubr.bf16.gmra.mrb[0].mxu0 %v475
        %v933 = vpop.f32.mrb[0].mxu0
        %v934 = vadd.f32 %v885, %v933
        %v935 = vpop.f32.mrb[0].mxu0
        %v936 = vpop.f32.mrb[0].mxu0
        %v937 = vadd.f32 %v888, %v936
        %v938 = vpop.f32.mrb[0].mxu0
        %939 = vmatprep.mubr.bf16.mxu0 0
        %940 = vmatmul.mubr.bf16.gmra.mrb[0].mxu0 %v480
        %v941 = vpop.f32.mrb[0].mxu0
        %v942 = vadd.f32 %v893, %v941
        %v943 = vpop.f32.mrb[0].mxu0
        %v944 = vpop.f32.mrb[0].mxu0
        %v945 = vadd.f32 %v896, %v944
        %v946 = vpop.f32.mrb[0].mxu0
        %947 = vdwg.mxu0
        %s948 = scalar_lea.vmem %s1, 320
        %v949 = vld [vmem:[%s948] sm:$0xf]
        %v950 = vld [vmem:[%s948 + $0x4] sm:$0xf]
        %v951 = vld [vmem:[%s948 + $0x8] sm:$0xf]
        %v952 = vld [vmem:[%s948 + $0xc] sm:$0xf]
        %v953 = vld [vmem:[%s948 + $0x10] sm:$0xf]
        %v954 = vld [vmem:[%s948 + $0x14] sm:$0xf]
        %v955 = vld [vmem:[%s948 + $0x18] sm:$0xf]
        %v956 = vld [vmem:[%s948 + $0x1c] sm:$0xf]
        %v957 = vld [vmem:[%s948 + $0x20] sm:$0xf]
        %v958 = vld [vmem:[%s948 + $0x24] sm:$0xf]
        %v959 = vld [vmem:[%s948 + $0x28] sm:$0xf]
        %v960 = vld [vmem:[%s948 + $0x2c] sm:$0xf]
        %v961 = vld [vmem:[%s948 + $0x30] sm:$0xf]
        %v962 = vld [vmem:[%s948 + $0x34] sm:$0xf]
        %v963 = vld [vmem:[%s948 + $0x38] sm:$0xf]
        %v964 = vld [vmem:[%s948 + $0x3c] sm:$0xf]
        %v965 = vld [vmem:[%s948 + $0x40] sm:$0xf]
        %v966 = vld [vmem:[%s948 + $0x44] sm:$0xf]
        %v967 = vld [vmem:[%s948 + $0x48] sm:$0xf]
        %v968 = vld [vmem:[%s948 + $0x4c] sm:$0xf]
        %v969 = vld [vmem:[%s948 + $0x50] sm:$0xf]
        %v970 = vld [vmem:[%s948 + $0x54] sm:$0xf]
        %v971 = vld [vmem:[%s948 + $0x58] sm:$0xf]
        %v972 = vld [vmem:[%s948 + $0x5c] sm:$0xf]
        %v973 = vld [vmem:[%s948 + $0x60] sm:$0xf]
        %v974 = vld [vmem:[%s948 + $0x64] sm:$0xf]
        %v975 = vld [vmem:[%s948 + $0x68] sm:$0xf]
        %v976 = vld [vmem:[%s948 + $0x6c] sm:$0xf]
        %v977 = vld [vmem:[%s948 + $0x70] sm:$0xf]
        %v978 = vld [vmem:[%s948 + $0x74] sm:$0xf]
        %v979 = vld [vmem:[%s948 + $0x78] sm:$0xf]
        %v980 = vld [vmem:[%s948 + $0x7c] sm:$0xf]
        %v981 = vld [vmem:[%s948 + $0x80] sm:$0xf]
        %v982 = vld [vmem:[%s948 + $0x84] sm:$0xf]
        %v983 = vld [vmem:[%s948 + $0x88] sm:$0xf]
        %v984 = vld [vmem:[%s948 + $0x8c] sm:$0xf]
        %v985 = vld [vmem:[%s948 + $0x90] sm:$0xf]
        %v986 = vld [vmem:[%s948 + $0x94] sm:$0xf]
        %v987 = vld [vmem:[%s948 + $0x98] sm:$0xf]
        %v988 = vld [vmem:[%s948 + $0x9c] sm:$0xf]
        %v989 = vld [vmem:[%s948 + $0xa0] sm:$0xf]
        %v990 = vld [vmem:[%s948 + $0xa4] sm:$0xf]
        %v991 = vld [vmem:[%s948 + $0xa8] sm:$0xf]
        %v992 = vld [vmem:[%s948 + $0xac] sm:$0xf]
        %v993 = vld [vmem:[%s948 + $0xb0] sm:$0xf]
        %v994 = vld [vmem:[%s948 + $0xb4] sm:$0xf]
        %v995 = vld [vmem:[%s948 + $0xb8] sm:$0xf]
        %v996 = vld [vmem:[%s948 + $0xbc] sm:$0xf]
        %v997 = vld [vmem:[%s948 + $0xc0] sm:$0xf]
        %v998 = vld [vmem:[%s948 + $0xc4] sm:$0xf]
        %v999 = vld [vmem:[%s948 + $0xc8] sm:$0xf]
        %v1000 = vld [vmem:[%s948 + $0xcc] sm:$0xf]
        %v1001 = vld [vmem:[%s948 + $0xd0] sm:$0xf]
        %v1002 = vld [vmem:[%s948 + $0xd4] sm:$0xf]
        %v1003 = vld [vmem:[%s948 + $0xd8] sm:$0xf]
        %v1004 = vld [vmem:[%s948 + $0xdc] sm:$0xf]
        %v1005 = vld [vmem:[%s948 + $0xe0] sm:$0xf]
        %v1006 = vld [vmem:[%s948 + $0xe4] sm:$0xf]
        %v1007 = vld [vmem:[%s948 + $0xe8] sm:$0xf]
        %v1008 = vld [vmem:[%s948 + $0xec] sm:$0xf]
        %v1009 = vld [vmem:[%s948 + $0xf0] sm:$0xf]
        %v1010 = vld [vmem:[%s948 + $0xf4] sm:$0xf]
        %v1011 = vld [vmem:[%s948 + $0xf8] sm:$0xf]
        %v1012 = vld [vmem:[%s948 + $0xfc] sm:$0xf]
        %v1013 = vld [vmem:[%s948 + $0x100] sm:$0xf]
        %v1014 = vld [vmem:[%s948 + $0x104] sm:$0xf]
        %v1015 = vld [vmem:[%s948 + $0x108] sm:$0xf]
        %v1016 = vld [vmem:[%s948 + $0x10c] sm:$0xf]
        %v1017 = vld [vmem:[%s948 + $0x110] sm:$0xf]
        %v1018 = vld [vmem:[%s948 + $0x114] sm:$0xf]
        %v1019 = vld [vmem:[%s948 + $0x118] sm:$0xf]
        %v1020 = vld [vmem:[%s948 + $0x11c] sm:$0xf]
        %v1021 = vld [vmem:[%s948 + $0x120] sm:$0xf]
        %v1022 = vld [vmem:[%s948 + $0x124] sm:$0xf]
        %v1023 = vld [vmem:[%s948 + $0x128] sm:$0xf]
        %v1024 = vld [vmem:[%s948 + $0x12c] sm:$0xf]
        %v1025 = vld [vmem:[%s948 + $0x130] sm:$0xf]
        %v1026 = vld [vmem:[%s948 + $0x134] sm:$0xf]
        %v1027 = vld [vmem:[%s948 + $0x138] sm:$0xf]
        %v1028 = vld [vmem:[%s948 + $0x13c] sm:$0xf]
        %v1109 = vunpack.c.l.b16 %v949
        %v1110 = vunpack.c.l.b16 %v950
        %v1111 = vunpack.c.l.b16 %v951
        %v1112 = vunpack.c.l.b16 %v952
        %v1113 = vunpack.c.l.b16 %v953
        %v1114 = vunpack.c.l.b16 %v954
        %v1115 = vunpack.c.l.b16 %v955
        %v1116 = vunpack.c.l.b16 %v956
        %v1117 = vunpack.c.l.b16 %v957
        %v1118 = vunpack.c.l.b16 %v958
        %v1119 = vunpack.c.l.b16 %v959
        %v1120 = vunpack.c.l.b16 %v960
        %v1121 = vunpack.c.l.b16 %v961
        %v1122 = vunpack.c.l.b16 %v962
        %v1123 = vunpack.c.l.b16 %v963
        %v1124 = vunpack.c.l.b16 %v964
        %v1125 = vunpack.c.l.b16 %v965
        %v1126 = vunpack.c.l.b16 %v966
        %v1127 = vunpack.c.l.b16 %v967
        %v1128 = vunpack.c.l.b16 %v968
        %v1129 = vunpack.c.l.b16 %v969
        %v1130 = vunpack.c.l.b16 %v970
        %v1131 = vunpack.c.l.b16 %v971
        %v1132 = vunpack.c.l.b16 %v972
        %v1133 = vunpack.c.l.b16 %v973
        %v1134 = vunpack.c.l.b16 %v974
        %v1135 = vunpack.c.l.b16 %v975
        %v1136 = vunpack.c.l.b16 %v976
        %v1137 = vunpack.c.l.b16 %v977
        %v1138 = vunpack.c.l.b16 %v978
        %v1139 = vunpack.c.l.b16 %v979
        %v1140 = vunpack.c.l.b16 %v980
        %v1141 = vunpack.c.l.b16 %v981
        %v1142 = vunpack.c.l.b16 %v982
        %v1143 = vunpack.c.l.b16 %v983
        %v1144 = vunpack.c.l.b16 %v984
        %v1145 = vunpack.c.l.b16 %v985
        %v1146 = vunpack.c.l.b16 %v986
        %v1147 = vunpack.c.l.b16 %v987
        %v1148 = vunpack.c.l.b16 %v988
        %v1149 = vunpack.c.l.b16 %v989
        %v1150 = vunpack.c.l.b16 %v990
        %v1151 = vunpack.c.l.b16 %v991
        %v1152 = vunpack.c.l.b16 %v992
        %v1153 = vunpack.c.l.b16 %v993
        %v1154 = vunpack.c.l.b16 %v994
        %v1155 = vunpack.c.l.b16 %v995
        %v1156 = vunpack.c.l.b16 %v996
        %v1157 = vunpack.c.l.b16 %v997
        %v1158 = vunpack.c.l.b16 %v998
        %v1159 = vunpack.c.l.b16 %v999
        %v1160 = vunpack.c.l.b16 %v1000
        %v1161 = vunpack.c.l.b16 %v1001
        %v1162 = vunpack.c.l.b16 %v1002
        %v1163 = vunpack.c.l.b16 %v1003
        %v1164 = vunpack.c.l.b16 %v1004
        %v1165 = vunpack.c.l.b16 %v1005
        %v1166 = vunpack.c.l.b16 %v1006
        %v1167 = vunpack.c.l.b16 %v1007
        %v1168 = vunpack.c.l.b16 %v1008
        %v1169 = vunpack.c.l.b16 %v1009
        %v1170 = vunpack.c.l.b16 %v1010
        %v1171 = vunpack.c.l.b16 %v1011
        %v1172 = vunpack.c.l.b16 %v1012
        %v1173 = vunpack.c.l.b16 %v1013
        %v1174 = vunpack.c.l.b16 %v1014
        %v1175 = vunpack.c.l.b16 %v1015
        %v1176 = vunpack.c.l.b16 %v1016
        %v1177 = vunpack.c.l.b16 %v1017
        %v1178 = vunpack.c.l.b16 %v1018
        %v1179 = vunpack.c.l.b16 %v1019
        %v1180 = vunpack.c.l.b16 %v1020
        %v1181 = vunpack.c.l.b16 %v1021
        %v1182 = vunpack.c.l.b16 %v1022
        %v1183 = vunpack.c.l.b16 %v1023
        %v1184 = vunpack.c.l.b16 %v1024
        %v1185 = vunpack.c.l.b16 %v1025
        %v1186 = vunpack.c.l.b16 %v1026
        %v1187 = vunpack.c.l.b16 %v1027
        %v1188 = vunpack.c.l.b16 %v1028
        %v1189 = vpack.c.b16 %v1110, %v1109
        %v1190 = vpack.c.b16 %v1112, %v1111
        %v1191 = vpack.c.b16 %v1114, %v1113
        %v1192 = vpack.c.b16 %v1116, %v1115
        %v1193 = vpack.c.b16 %v1118, %v1117
        %v1194 = vpack.c.b16 %v1120, %v1119
        %v1195 = vpack.c.b16 %v1122, %v1121
        %v1196 = vpack.c.b16 %v1124, %v1123
        %v1197 = vpack.c.b16 %v1126, %v1125
        %v1198 = vpack.c.b16 %v1128, %v1127
        %v1199 = vpack.c.b16 %v1130, %v1129
        %v1200 = vpack.c.b16 %v1132, %v1131
        %v1201 = vpack.c.b16 %v1134, %v1133
        %v1202 = vpack.c.b16 %v1136, %v1135
        %v1203 = vpack.c.b16 %v1138, %v1137
        %v1204 = vpack.c.b16 %v1140, %v1139
        %v1205 = vpack.c.b16 %v1142, %v1141
        %v1206 = vpack.c.b16 %v1144, %v1143
        %v1207 = vpack.c.b16 %v1146, %v1145
        %v1208 = vpack.c.b16 %v1148, %v1147
        %v1209 = vpack.c.b16 %v1150, %v1149
        %v1210 = vpack.c.b16 %v1152, %v1151
        %v1211 = vpack.c.b16 %v1154, %v1153
        %v1212 = vpack.c.b16 %v1156, %v1155
        %v1213 = vpack.c.b16 %v1158, %v1157
        %v1214 = vpack.c.b16 %v1160, %v1159
        %v1215 = vpack.c.b16 %v1162, %v1161
        %v1216 = vpack.c.b16 %v1164, %v1163
        %v1217 = vpack.c.b16 %v1166, %v1165
        %v1218 = vpack.c.b16 %v1168, %v1167
        %v1219 = vpack.c.b16 %v1170, %v1169
        %v1220 = vpack.c.b16 %v1172, %v1171
        %v1221 = vpack.c.b16 %v1174, %v1173
        %v1222 = vpack.c.b16 %v1176, %v1175
        %v1223 = vpack.c.b16 %v1178, %v1177
        %v1224 = vpack.c.b16 %v1180, %v1179
        %v1225 = vpack.c.b16 %v1182, %v1181
        %v1226 = vpack.c.b16 %v1184, %v1183
        %v1227 = vpack.c.b16 %v1186, %v1185
        %v1228 = vpack.c.b16 %v1188, %v1187
        %1269 = vmatprep.subr.bf16.mxu0 0
        %1270 = vmatpush1.bf16.msra.mxu0 %v1189
        %1271 = vmatprep.subr.bf16.mxu0 0
        %1272 = vmatpush1.bf16.msra.mxu0 %v1190
        %1273 = vmatprep.subr.bf16.mxu0 0
        %1274 = vmatpush1.bf16.msra.mxu0 %v1191
        %1275 = vmatprep.subr.bf16.mxu0 0
        %1276 = vmatpush1.bf16.msra.mxu0 %v1192
        %1277 = vmatprep.subr.bf16.mxu0 0
        %1278 = vmatpush1.bf16.msra.mxu0 %v1193
        %1279 = vmatprep.subr.bf16.mxu0 0
        %1280 = vmatpush1.bf16.msra.mxu0 %v1194
        %1281 = vmatprep.subr.bf16.mxu0 0
        %1282 = vmatpush1.bf16.msra.mxu0 %v1195
        %1283 = vmatprep.subr.bf16.mxu0 0
        %1284 = vmatpush1.bf16.msra.mxu0 %v1196
        %1285 = vmatprep.subr.bf16.mxu0 0
        %1286 = vmatpush1.bf16.msra.mxu0 %v1197
        %1287 = vmatprep.subr.bf16.mxu0 0
        %1288 = vmatpush1.bf16.msra.mxu0 %v1198
        %1289 = vmatprep.subr.bf16.mxu0 0
        %1290 = vmatpush1.bf16.msra.mxu0 %v1199
        %1291 = vmatprep.subr.bf16.mxu0 0
        %1292 = vmatpush1.bf16.msra.mxu0 %v1200
        %1293 = vmatprep.subr.bf16.mxu0 0
        %1294 = vmatpush1.bf16.msra.mxu0 %v1201
        %1295 = vmatprep.subr.bf16.mxu0 0
        %1296 = vmatpush1.bf16.msra.mxu0 %v1202
        %1297 = vmatprep.subr.bf16.mxu0 0
        %1298 = vmatpush1.bf16.msra.mxu0 %v1203
        %1299 = vmatprep.subr.bf16.mxu0 0
        %1300 = vmatpush1.bf16.msra.mxu0 %v1204
        %1301 = vmatprep.mubr.bf16.mxu0 %v472
        %1302 = vmatmul.mubr.bf16.gmra.mrb[0].mxu0 %v471
        %v1303 = vpop.f32.mrb[0].mxu0
        %v1304 = vadd.f32 0.0, %v1303
        %v1305 = vpop.f32.mrb[0].mxu0
        %v1306 = vpop.f32.mrb[0].mxu0
        %v1307 = vadd.f32 0.0, %v1306
        %v1308 = vpop.f32.mrb[0].mxu0
        %1309 = vmatprep.mubr.bf16.mxu0 %v477
        %1310 = vmatmul.mubr.bf16.gmra.mrb[0].mxu0 %v476
        %v1311 = vpop.f32.mrb[0].mxu0
        %v1312 = vadd.f32 0.0, %v1311
        %v1313 = vpop.f32.mrb[0].mxu0
        %v1314 = vpop.f32.mrb[0].mxu0
        %v1315 = vadd.f32 0.0, %v1314
        %v1316 = vpop.f32.mrb[0].mxu0
        %1317 = vdwg.mxu0
        %1318 = vmatprep.subr.bf16.mxu0 0
        %1319 = vmatpush1.bf16.msra.mxu0 %v1205
        %1320 = vmatprep.subr.bf16.mxu0 0
        %1321 = vmatpush1.bf16.msra.mxu0 %v1206
        %1322 = vmatprep.subr.bf16.mxu0 0
        %1323 = vmatpush1.bf16.msra.mxu0 %v1207
        %1324 = vmatprep.subr.bf16.mxu0 0
        %1325 = vmatpush1.bf16.msra.mxu0 %v1208
        %1326 = vmatprep.subr.bf16.mxu0 0
        %1327 = vmatpush1.bf16.msra.mxu0 %v1209
        %1328 = vmatprep.subr.bf16.mxu0 0
        %1329 = vmatpush1.bf16.msra.mxu0 %v1210
        %1330 = vmatprep.subr.bf16.mxu0 0
        %1331 = vmatpush1.bf16.msra.mxu0 %v1211
        %1332 = vmatprep.subr.bf16.mxu0 0
        %1333 = vmatpush1.bf16.msra.mxu0 %v1212
        %1334 = vmatprep.subr.bf16.mxu0 0
        %1335 = vmatpush1.bf16.msra.mxu0 %v1213
        %1336 = vmatprep.subr.bf16.mxu0 0
        %1337 = vmatpush1.bf16.msra.mxu0 %v1214
        %1338 = vmatprep.subr.bf16.mxu0 0
        %1339 = vmatpush1.bf16.msra.mxu0 %v1215
        %1340 = vmatprep.subr.bf16.mxu0 0
        %1341 = vmatpush1.bf16.msra.mxu0 %v1216
        %1342 = vmatprep.subr.bf16.mxu0 0
        %1343 = vmatpush1.bf16.msra.mxu0 %v1217
        %1344 = vmatprep.subr.bf16.mxu0 0
        %1345 = vmatpush1.bf16.msra.mxu0 %v1218
        %1346 = vmatprep.subr.bf16.mxu0 0
        %1347 = vmatpush1.bf16.msra.mxu0 %v1219
        %1348 = vmatprep.subr.bf16.mxu0 0
        %1349 = vmatpush1.bf16.msra.mxu0 %v1220
        %1350 = vmatprep.mubr.bf16.mxu0 %v474
        %1351 = vmatmul.mubr.bf16.gmra.mrb[0].mxu0 %v473
        %v1352 = vpop.f32.mrb[0].mxu0
        %v1353 = vadd.f32 %v1304, %v1352
        %v1354 = vpop.f32.mrb[0].mxu0
        %v1355 = vpop.f32.mrb[0].mxu0
        %v1356 = vadd.f32 %v1307, %v1355
        %v1357 = vpop.f32.mrb[0].mxu0
        %1358 = vmatprep.mubr.bf16.mxu0 %v479
        %1359 = vmatmul.mubr.bf16.gmra.mrb[0].mxu0 %v478
        %v1360 = vpop.f32.mrb[0].mxu0
        %v1361 = vadd.f32 %v1312, %v1360
        %v1362 = vpop.f32.mrb[0].mxu0
        %v1363 = vpop.f32.mrb[0].mxu0
        %v1364 = vadd.f32 %v1315, %v1363
        %v1365 = vpop.f32.mrb[0].mxu0
        %1366 = vdwg.mxu0
        %1367 = vmatprep.subr.bf16.mxu0 0
        %1368 = vmatpush1.bf16.msra.mxu0 %v1221
        %1369 = vmatprep.subr.bf16.mxu0 0
        %1370 = vmatpush1.bf16.msra.mxu0 %v1222
        %1371 = vmatprep.subr.bf16.mxu0 0
        %1372 = vmatpush1.bf16.msra.mxu0 %v1223
        %1373 = vmatprep.subr.bf16.mxu0 0
        %1374 = vmatpush1.bf16.msra.mxu0 %v1224
        %1375 = vmatprep.subr.bf16.mxu0 0
        %1376 = vmatpush1.bf16.msra.mxu0 %v1225
        %1377 = vmatprep.subr.bf16.mxu0 0
        %1378 = vmatpush1.bf16.msra.mxu0 %v1226
        %1379 = vmatprep.subr.bf16.mxu0 0
        %1380 = vmatpush1.bf16.msra.mxu0 %v1227
        %1381 = vmatprep.subr.bf16.mxu0 0
        %1382 = vmatpush1.bf16.msra.mxu0 %v1228
        %1383 = vmatprep.subr.bf16.mxu0 0
        %1384 = vmatpush1.bf16.msra.mxu0 0
        %1385 = vmatprep.subr.bf16.mxu0 0
        %1386 = vmatpush1.bf16.msra.mxu0 0
        %1387 = vmatprep.subr.bf16.mxu0 0
        %1388 = vmatpush1.bf16.msra.mxu0 0
        %1389 = vmatprep.subr.bf16.mxu0 0
        %1390 = vmatpush1.bf16.msra.mxu0 0
        %1391 = vmatprep.subr.bf16.mxu0 0
        %1392 = vmatpush1.bf16.msra.mxu0 0
        %1393 = vmatprep.subr.bf16.mxu0 0
        %1394 = vmatpush1.bf16.msra.mxu0 0
        %1395 = vmatprep.subr.bf16.mxu0 0
        %1396 = vmatpush1.bf16.msra.mxu0 0
        %1397 = vmatprep.subr.bf16.mxu0 0
        %1398 = vmatpush1.bf16.msra.mxu0 0
        %1399 = vmatprep.mubr.bf16.mxu0 0
        %1400 = vmatmul.mubr.bf16.gmra.mrb[0].mxu0 %v475
        %v1401 = vpop.f32.mrb[0].mxu0
        %v1402 = vadd.f32 %v1353, %v1401
        %v1403 = vpop.f32.mrb[0].mxu0
        %v1404 = vpop.f32.mrb[0].mxu0
        %v1405 = vadd.f32 %v1356, %v1404
        %v1406 = vpop.f32.mrb[0].mxu0
        %1407 = vmatprep.mubr.bf16.mxu0 0
        %1408 = vmatmul.mubr.bf16.gmra.mrb[0].mxu0 %v480
        %v1409 = vpop.f32.mrb[0].mxu0
        %v1410 = vadd.f32 %v1361, %v1409
        %v1411 = vpop.f32.mrb[0].mxu0
        %v1412 = vpop.f32.mrb[0].mxu0
        %v1413 = vadd.f32 %v1364, %v1412
        %v1414 = vpop.f32.mrb[0].mxu0
        %1415 = vdwg.mxu0
        %v1416 = vmax.f32 %v934, %v1402
        %v1417 = vmax.f32 %v937, %v1405
        %v1418 = vmax.f32 %v942, %v1410
        %v1419 = vmax.f32 %v945, %v1413
        %v1421 = vrot.slane %v1416, 1
        %v1423 = vmax.f32 %v1416, %v1421
        %v1425 = vrot.slane %v1417, 1
        %v1427 = vmax.f32 %v1417, %v1425
        %v1429 = vrot.slane %v1418, 1
        %v1431 = vmax.f32 %v1418, %v1429
        %v1433 = vrot.slane %v1419, 1
        %v1435 = vmax.f32 %v1419, %v1433
        %v1437 = vrot.slane %v1423, 1
        %v1439 = vrot.slane %v1423, 2
        %v1441 = vrot.slane %v1423, 3
        %v1444 = vrot.slane %v1427, 4
        %v1446 = vrot.slane %v1427, 5
        %v1448 = vrot.slane %v1427, 6
        %v1450 = vrot.slane %v1427, 7
        %v1453 = vrot.slane %v1431, 1
        %v1455 = vrot.slane %v1431, 2
        %v1457 = vrot.slane %v1431, 3
        %v1460 = vrot.slane %v1435, 4
        %v1462 = vrot.slane %v1435, 5
        %vm1464 = vcmask 1040384
        %v1465 = vsel %vm1464, %v1423, %v1437
        %vm1466 = vcmask 1041408
        %v1467 = vsel %vm1466, %v1465, %v1439
        %vm1468 = vcmask 1042432
        %v1469 = vsel %vm1468, %v1467, %v1441
        %v1470 = vsel %vm459, %v1469, %v1444
        %v1471 = vsel %vm447, %v1470, %v1446
        %v1472 = vsel %vm435, %v1471, %v1448
        %v1473 = vsel %vm423, %v1472, %v1450
        %v1474 = vsel %vm1464, %v1431, %v1453
        %v1475 = vsel %vm1466, %v1474, %v1455
        %v1476 = vsel %vm1468, %v1475, %v1457
        %v1477 = vsel %vm459, %v1476, %v1460
        %v1478 = vsel %vm447, %v1477, %v1462
        %v1479 = vld [vmem:[%s2] sm:$0x1]
        %v1481 = vlaneseq
        %v1482 = vshrl.u32 %v1481, 7
        %v1483 = vsub.s32 0, %v1482
        %v1484 = vrot.slane %v1479, %v1483
        %v1486 = vadd.f32 %v1473, %v1484
        %v1487 = vadd.f32 %v1478, %v1484
        %v1488 = vmax.f32 %v1486, 0.0
        %v1489 = vmax.f32 %v1487, 0.0
        %v1492 = vrot.slane %v1488, 1
        %v1493 = vrot.slane %v1489, 1
        %v1494 = vsel %vm423, %v1492, %v1493
        %v1497 = vrot.slane %v1488, 2
        %v1498 = vrot.slane %v1489, 2
        %v1499 = vsel %vm435, %v1497, %v1498
        %v1502 = vrot.slane %v1488, 3
        %v1503 = vrot.slane %v1489, 3
        %v1504 = vsel %vm447, %v1502, %v1503
        %v1507 = vrot.slane %v1488, 4
        %v1508 = vrot.slane %v1489, 4
        %v1509 = vsel %vm459, %v1507, %v1508
        %v1512 = vpack.c.bf16 %v1489, %v1488
        %v1513 = vpack.c.bf16 %v1493, %v1494
        %v1514 = vpack.c.bf16 %v1498, %v1499
        %v1515 = vpack.c.bf16 %v1503, %v1504
        %v1516 = vpack.c.bf16 %v1508, %v1509
        %v1517 = vld [vmem:[#allocation2] sm:$0xf]
        %v1518 = vld [vmem:[#allocation2 + $0x4] sm:$0xf]
        %v1519 = vld [vmem:[#allocation2 + $0x8] sm:$0xf]
        %v1520 = vld [vmem:[#allocation2 + $0xc] sm:$0xf]
        %v1521 = vld [vmem:[#allocation2 + $0x10] sm:$0xf]
        %v1522 = vld [vmem:[#allocation2 + $0x14] sm:$0xf]
        %v1523 = vld [vmem:[#allocation2 + $0x18] sm:$0xf]
        %v1524 = vld [vmem:[#allocation2 + $0x1c] sm:$0xf]
        %v1525 = vld [vmem:[#allocation2 + $0x20] sm:$0xf]
        %v1526 = vld [vmem:[#allocation2 + $0x24] sm:$0xf]
        %v1527 = vld [vmem:[#allocation2 + $0x28] sm:$0xf]
        %v1528 = vld [vmem:[#allocation2 + $0x2c] sm:$0xf]
        %v1529 = vld [vmem:[#allocation2 + $0x30] sm:$0xf]
        %v1530 = vld [vmem:[#allocation2 + $0x34] sm:$0xf]
        %v1531 = vld [vmem:[#allocation2 + $0x38] sm:$0xf]
        %v1532 = vld [vmem:[#allocation2 + $0x3c] sm:$0xf]
        %v1533 = vld [vmem:[#allocation2 + $0x40] sm:$0xf]
        %v1534 = vld [vmem:[#allocation2 + $0x44] sm:$0xf]
        %v1535 = vld [vmem:[#allocation2 + $0x48] sm:$0xf]
        %v1536 = vld [vmem:[#allocation2 + $0x4c] sm:$0xf]
        %v1537 = vld [vmem:[#allocation2 + $0x50] sm:$0xf]
        %v1538 = vld [vmem:[#allocation2 + $0x54] sm:$0xf]
        %v1539 = vld [vmem:[#allocation2 + $0x58] sm:$0xf]
        %v1540 = vld [vmem:[#allocation2 + $0x5c] sm:$0xf]
        %v1541 = vld [vmem:[#allocation2 + $0x60] sm:$0xf]
        %v1542 = vld [vmem:[#allocation2 + $0x64] sm:$0xf]
        %v1543 = vld [vmem:[#allocation2 + $0x68] sm:$0xf]
        %v1544 = vld [vmem:[#allocation2 + $0x6c] sm:$0xf]
        %v1545 = vld [vmem:[#allocation2 + $0x70] sm:$0xf]
        %v1546 = vld [vmem:[#allocation2 + $0x74] sm:$0xf]
        %v1547 = vld [vmem:[#allocation2 + $0x78] sm:$0xf]
        %v1548 = vld [vmem:[#allocation2 + $0x7c] sm:$0xf]
        %v1549 = vld [vmem:[#allocation2 + $0x80] sm:$0xf]
        %v1550 = vld [vmem:[#allocation2 + $0x84] sm:$0xf]
        %v1551 = vld [vmem:[#allocation2 + $0x88] sm:$0xf]
        %v1552 = vld [vmem:[#allocation2 + $0x8c] sm:$0xf]
        %v1553 = vld [vmem:[#allocation2 + $0x90] sm:$0xf]
        %v1554 = vld [vmem:[#allocation2 + $0x94] sm:$0xf]
        %v1555 = vld [vmem:[#allocation2 + $0x98] sm:$0xf]
        %v1556 = vld [vmem:[#allocation2 + $0x9c] sm:$0xf]
        %v1557 = vld [vmem:[#allocation2 + $0xa0] sm:$0xf]
        %v1558 = vld [vmem:[#allocation2 + $0xa4] sm:$0xf]
        %v1559 = vld [vmem:[#allocation2 + $0xa8] sm:$0xf]
        %v1560 = vld [vmem:[#allocation2 + $0xac] sm:$0xf]
        %v1561 = vld [vmem:[#allocation2 + $0xb0] sm:$0xf]
        %v1562 = vld [vmem:[#allocation2 + $0xb4] sm:$0xf]
        %v1563 = vld [vmem:[#allocation2 + $0xb8] sm:$0xf]
        %v1564 = vld [vmem:[#allocation2 + $0xbc] sm:$0xf]
        %v1565 = vld [vmem:[#allocation2 + $0xc0] sm:$0xf]
        %v1566 = vld [vmem:[#allocation2 + $0xc4] sm:$0xf]
        %v1567 = vld [vmem:[#allocation2 + $0xc8] sm:$0xf]
        %v1568 = vld [vmem:[#allocation2 + $0xcc] sm:$0xf]
        %v1569 = vld [vmem:[#allocation2 + $0xd0] sm:$0xf]
        %v1570 = vld [vmem:[#allocation2 + $0xd4] sm:$0xf]
        %v1571 = vld [vmem:[#allocation2 + $0xd8] sm:$0xf]
        %v1572 = vld [vmem:[#allocation2 + $0xdc] sm:$0xf]
        %v1573 = vld [vmem:[#allocation2 + $0xe0] sm:$0xf]
        %v1574 = vld [vmem:[#allocation2 + $0xe4] sm:$0xf]
        %v1575 = vld [vmem:[#allocation2 + $0xe8] sm:$0xf]
        %v1576 = vld [vmem:[#allocation2 + $0xec] sm:$0xf]
        %v1577 = vld [vmem:[#allocation2 + $0xf0] sm:$0xf]
        %v1578 = vld [vmem:[#allocation2 + $0xf4] sm:$0xf]
        %v1579 = vld [vmem:[#allocation2 + $0xf8] sm:$0xf]
        %v1580 = vld [vmem:[#allocation2 + $0xfc] sm:$0xf]
        %v1581 = vld [vmem:[#allocation2 + $0x100] sm:$0xf]
        %v1582 = vld [vmem:[#allocation2 + $0x104] sm:$0xf]
        %v1583 = vld [vmem:[#allocation2 + $0x108] sm:$0xf]
        %v1584 = vld [vmem:[#allocation2 + $0x10c] sm:$0xf]
        %v1585 = vld [vmem:[#allocation2 + $0x110] sm:$0xf]
        %v1586 = vld [vmem:[#allocation2 + $0x114] sm:$0xf]
        %v1587 = vld [vmem:[#allocation2 + $0x118] sm:$0xf]
        %v1588 = vld [vmem:[#allocation2 + $0x11c] sm:$0xf]
        %v1589 = vld [vmem:[#allocation2 + $0x120] sm:$0xf]
        %v1590 = vld [vmem:[#allocation2 + $0x124] sm:$0xf]
        %v1591 = vld [vmem:[#allocation2 + $0x128] sm:$0xf]
        %v1592 = vld [vmem:[#allocation2 + $0x12c] sm:$0xf]
        %v1593 = vld [vmem:[#allocation2 + $0x130] sm:$0xf]
        %v1594 = vld [vmem:[#allocation2 + $0x134] sm:$0xf]
        %v1595 = vld [vmem:[#allocation2 + $0x138] sm:$0xf]
        %v1596 = vld [vmem:[#allocation2 + $0x13c] sm:$0xf]
        %v1677 = vunpack.c.l.b16 %v1517
        %v1678 = vunpack.c.l.b16 %v1518
        %v1679 = vunpack.c.l.b16 %v1519
        %v1680 = vunpack.c.l.b16 %v1520
        %v1681 = vunpack.c.l.b16 %v1521
        %v1682 = vunpack.c.l.b16 %v1522
        %v1683 = vunpack.c.l.b16 %v1523
        %v1684 = vunpack.c.l.b16 %v1524
        %v1685 = vunpack.c.l.b16 %v1525
        %v1686 = vunpack.c.l.b16 %v1526
        %v1687 = vunpack.c.l.b16 %v1527
        %v1688 = vunpack.c.l.b16 %v1528
        %v1689 = vunpack.c.l.b16 %v1529
        %v1690 = vunpack.c.l.b16 %v1530
        %v1691 = vunpack.c.l.b16 %v1531
        %v1692 = vunpack.c.l.b16 %v1532
        %v1693 = vunpack.c.l.b16 %v1533
        %v1694 = vunpack.c.l.b16 %v1534
        %v1695 = vunpack.c.l.b16 %v1535
        %v1696 = vunpack.c.l.b16 %v1536
        %v1697 = vunpack.c.l.b16 %v1537
        %v1698 = vunpack.c.l.b16 %v1538
        %v1699 = vunpack.c.l.b16 %v1539
        %v1700 = vunpack.c.l.b16 %v1540
        %v1701 = vunpack.c.l.b16 %v1541
        %v1702 = vunpack.c.l.b16 %v1542
        %v1703 = vunpack.c.l.b16 %v1543
        %v1704 = vunpack.c.l.b16 %v1544
        %v1705 = vunpack.c.l.b16 %v1545
        %v1706 = vunpack.c.l.b16 %v1546
        %v1707 = vunpack.c.l.b16 %v1547
        %v1708 = vunpack.c.l.b16 %v1548
        %v1709 = vunpack.c.l.b16 %v1549
        %v1710 = vunpack.c.l.b16 %v1550
        %v1711 = vunpack.c.l.b16 %v1551
        %v1712 = vunpack.c.l.b16 %v1552
        %v1713 = vunpack.c.l.b16 %v1553
        %v1714 = vunpack.c.l.b16 %v1554
        %v1715 = vunpack.c.l.b16 %v1555
        %v1716 = vunpack.c.l.b16 %v1556
        %v1717 = vunpack.c.l.b16 %v1557
        %v1718 = vunpack.c.l.b16 %v1558
        %v1719 = vunpack.c.l.b16 %v1559
        %v1720 = vunpack.c.l.b16 %v1560
        %v1721 = vunpack.c.l.b16 %v1561
        %v1722 = vunpack.c.l.b16 %v1562
        %v1723 = vunpack.c.l.b16 %v1563
        %v1724 = vunpack.c.l.b16 %v1564
        %v1725 = vunpack.c.l.b16 %v1565
        %v1726 = vunpack.c.l.b16 %v1566
        %v1727 = vunpack.c.l.b16 %v1567
        %v1728 = vunpack.c.l.b16 %v1568
        %v1729 = vunpack.c.l.b16 %v1569
        %v1730 = vunpack.c.l.b16 %v1570
        %v1731 = vunpack.c.l.b16 %v1571
        %v1732 = vunpack.c.l.b16 %v1572
        %v1733 = vunpack.c.l.b16 %v1573
        %v1734 = vunpack.c.l.b16 %v1574
        %v1735 = vunpack.c.l.b16 %v1575
        %v1736 = vunpack.c.l.b16 %v1576
        %v1737 = vunpack.c.l.b16 %v1577
        %v1738 = vunpack.c.l.b16 %v1578
        %v1739 = vunpack.c.l.b16 %v1579
        %v1740 = vunpack.c.l.b16 %v1580
        %v1741 = vunpack.c.l.b16 %v1581
        %v1742 = vunpack.c.l.b16 %v1582
        %v1743 = vunpack.c.l.b16 %v1583
        %v1744 = vunpack.c.l.b16 %v1584
        %v1745 = vunpack.c.l.b16 %v1585
        %v1746 = vunpack.c.l.b16 %v1586
        %v1747 = vunpack.c.l.b16 %v1587
        %v1748 = vunpack.c.l.b16 %v1588
        %v1749 = vunpack.c.l.b16 %v1589
        %v1750 = vunpack.c.l.b16 %v1590
        %v1751 = vunpack.c.l.b16 %v1591
        %v1752 = vunpack.c.l.b16 %v1592
        %v1753 = vunpack.c.l.b16 %v1593
        %v1754 = vunpack.c.l.b16 %v1594
        %v1755 = vunpack.c.l.b16 %v1595
        %v1756 = vunpack.c.l.b16 %v1596
        %v1757 = vpack.c.b16 %v1678, %v1677
        %v1758 = vpack.c.b16 %v1680, %v1679
        %v1759 = vpack.c.b16 %v1682, %v1681
        %v1760 = vpack.c.b16 %v1684, %v1683
        %v1761 = vpack.c.b16 %v1686, %v1685
        %v1762 = vpack.c.b16 %v1688, %v1687
        %v1763 = vpack.c.b16 %v1690, %v1689
        %v1764 = vpack.c.b16 %v1692, %v1691
        %v1765 = vpack.c.b16 %v1694, %v1693
        %v1766 = vpack.c.b16 %v1696, %v1695
        %v1767 = vpack.c.b16 %v1698, %v1697
        %v1768 = vpack.c.b16 %v1700, %v1699
        %v1769 = vpack.c.b16 %v1702, %v1701
        %v1770 = vpack.c.b16 %v1704, %v1703
        %v1771 = vpack.c.b16 %v1706, %v1705
        %v1772 = vpack.c.b16 %v1708, %v1707
        %v1773 = vpack.c.b16 %v1710, %v1709
        %v1774 = vpack.c.b16 %v1712, %v1711
        %v1775 = vpack.c.b16 %v1714, %v1713
        %v1776 = vpack.c.b16 %v1716, %v1715
        %v1777 = vpack.c.b16 %v1718, %v1717
        %v1778 = vpack.c.b16 %v1720, %v1719
        %v1779 = vpack.c.b16 %v1722, %v1721
        %v1780 = vpack.c.b16 %v1724, %v1723
        %v1781 = vpack.c.b16 %v1726, %v1725
        %v1782 = vpack.c.b16 %v1728, %v1727
        %v1783 = vpack.c.b16 %v1730, %v1729
        %v1784 = vpack.c.b16 %v1732, %v1731
        %v1785 = vpack.c.b16 %v1734, %v1733
        %v1786 = vpack.c.b16 %v1736, %v1735
        %v1787 = vpack.c.b16 %v1738, %v1737
        %v1788 = vpack.c.b16 %v1740, %v1739
        %v1789 = vpack.c.b16 %v1742, %v1741
        %v1790 = vpack.c.b16 %v1744, %v1743
        %v1791 = vpack.c.b16 %v1746, %v1745
        %v1792 = vpack.c.b16 %v1748, %v1747
        %v1793 = vpack.c.b16 %v1750, %v1749
        %v1794 = vpack.c.b16 %v1752, %v1751
        %v1795 = vpack.c.b16 %v1754, %v1753
        %v1796 = vpack.c.b16 %v1756, %v1755
        %1837 = vmatprep.subr.bf16.mxu0 0
        %1838 = vmatpush1.bf16.msra.mxu0 %v1757
        %1839 = vmatprep.subr.bf16.mxu0 0
        %1840 = vmatpush1.bf16.msra.mxu0 %v1758
        %1841 = vmatprep.subr.bf16.mxu0 0
        %1842 = vmatpush1.bf16.msra.mxu0 %v1759
        %1843 = vmatprep.subr.bf16.mxu0 0
        %1844 = vmatpush1.bf16.msra.mxu0 %v1760
        %1845 = vmatprep.subr.bf16.mxu0 0
        %1846 = vmatpush1.bf16.msra.mxu0 %v1761
        %1847 = vmatprep.subr.bf16.mxu0 0
        %1848 = vmatpush1.bf16.msra.mxu0 %v1762
        %1849 = vmatprep.subr.bf16.mxu0 0
        %1850 = vmatpush1.bf16.msra.mxu0 %v1763
        %1851 = vmatprep.subr.bf16.mxu0 0
        %1852 = vmatpush1.bf16.msra.mxu0 %v1764
        %1853 = vmatprep.subr.bf16.mxu0 0
        %1854 = vmatpush1.bf16.msra.mxu0 %v1765
        %1855 = vmatprep.subr.bf16.mxu0 0
        %1856 = vmatpush1.bf16.msra.mxu0 %v1766
        %1857 = vmatprep.subr.bf16.mxu0 0
        %1858 = vmatpush1.bf16.msra.mxu0 %v1767
        %1859 = vmatprep.subr.bf16.mxu0 0
        %1860 = vmatpush1.bf16.msra.mxu0 %v1768
        %1861 = vmatprep.subr.bf16.mxu0 0
        %1862 = vmatpush1.bf16.msra.mxu0 %v1769
        %1863 = vmatprep.subr.bf16.mxu0 0
        %1864 = vmatpush1.bf16.msra.mxu0 %v1770
        %1865 = vmatprep.subr.bf16.mxu0 0
        %1866 = vmatpush1.bf16.msra.mxu0 %v1771
        %1867 = vmatprep.subr.bf16.mxu0 0
        %1868 = vmatpush1.bf16.msra.mxu0 %v1772
        %1869 = vmatprep.mubr.bf16.mxu0 %v1513
        %1870 = vmatmul.mubr.bf16.gmra.mrb[0].mxu0 %v1512
        %v1871 = vpop.f32.mrb[0].mxu0
        %v1872 = vadd.f32 0.0, %v1871
        %v1873 = vpop.f32.mrb[0].mxu0
        %v1874 = vpop.f32.mrb[0].mxu0
        %v1875 = vadd.f32 0.0, %v1874
        %v1876 = vpop.f32.mrb[0].mxu0
        %1877 = vdwg.mxu0
        %1878 = vmatprep.subr.bf16.mxu0 0
        %1879 = vmatpush1.bf16.msra.mxu0 %v1773
        %1880 = vmatprep.subr.bf16.mxu0 0
        %1881 = vmatpush1.bf16.msra.mxu0 %v1774
        %1882 = vmatprep.subr.bf16.mxu0 0
        %1883 = vmatpush1.bf16.msra.mxu0 %v1775
        %1884 = vmatprep.subr.bf16.mxu0 0
        %1885 = vmatpush1.bf16.msra.mxu0 %v1776
        %1886 = vmatprep.subr.bf16.mxu0 0
        %1887 = vmatpush1.bf16.msra.mxu0 %v1777
        %1888 = vmatprep.subr.bf16.mxu0 0
        %1889 = vmatpush1.bf16.msra.mxu0 %v1778
        %1890 = vmatprep.subr.bf16.mxu0 0
        %1891 = vmatpush1.bf16.msra.mxu0 %v1779
        %1892 = vmatprep.subr.bf16.mxu0 0
        %1893 = vmatpush1.bf16.msra.mxu0 %v1780
        %1894 = vmatprep.subr.bf16.mxu0 0
        %1895 = vmatpush1.bf16.msra.mxu0 %v1781
        %1896 = vmatprep.subr.bf16.mxu0 0
        %1897 = vmatpush1.bf16.msra.mxu0 %v1782
        %1898 = vmatprep.subr.bf16.mxu0 0
        %1899 = vmatpush1.bf16.msra.mxu0 %v1783
        %1900 = vmatprep.subr.bf16.mxu0 0
        %1901 = vmatpush1.bf16.msra.mxu0 %v1784
        %1902 = vmatprep.subr.bf16.mxu0 0
        %1903 = vmatpush1.bf16.msra.mxu0 %v1785
        %1904 = vmatprep.subr.bf16.mxu0 0
        %1905 = vmatpush1.bf16.msra.mxu0 %v1786
        %1906 = vmatprep.subr.bf16.mxu0 0
        %1907 = vmatpush1.bf16.msra.mxu0 %v1787
        %1908 = vmatprep.subr.bf16.mxu0 0
        %1909 = vmatpush1.bf16.msra.mxu0 %v1788
        %1910 = vmatprep.mubr.bf16.mxu0 %v1515
        %1911 = vmatmul.mubr.bf16.gmra.mrb[0].mxu0 %v1514
        %v1912 = vpop.f32.mrb[0].mxu0
        %v1913 = vadd.f32 %v1872, %v1912
        %v1914 = vpop.f32.mrb[0].mxu0
        %v1915 = vpop.f32.mrb[0].mxu0
        %v1916 = vadd.f32 %v1875, %v1915
        %v1917 = vpop.f32.mrb[0].mxu0
        %1918 = vdwg.mxu0
        %1919 = vmatprep.subr.bf16.mxu0 0
        %1920 = vmatpush1.bf16.msra.mxu0 %v1789
        %1921 = vmatprep.subr.bf16.mxu0 0
        %1922 = vmatpush1.bf16.msra.mxu0 %v1790
        %1923 = vmatprep.subr.bf16.mxu0 0
        %1924 = vmatpush1.bf16.msra.mxu0 %v1791
        %1925 = vmatprep.subr.bf16.mxu0 0
        %1926 = vmatpush1.bf16.msra.mxu0 %v1792
        %1927 = vmatprep.subr.bf16.mxu0 0
        %1928 = vmatpush1.bf16.msra.mxu0 %v1793
        %1929 = vmatprep.subr.bf16.mxu0 0
        %1930 = vmatpush1.bf16.msra.mxu0 %v1794
        %1931 = vmatprep.subr.bf16.mxu0 0
        %1932 = vmatpush1.bf16.msra.mxu0 %v1795
        %1933 = vmatprep.subr.bf16.mxu0 0
        %1934 = vmatpush1.bf16.msra.mxu0 %v1796
        %1935 = vmatprep.subr.bf16.mxu0 0
        %1936 = vmatpush1.bf16.msra.mxu0 0
        %1937 = vmatprep.subr.bf16.mxu0 0
        %1938 = vmatpush1.bf16.msra.mxu0 0
        %1939 = vmatprep.subr.bf16.mxu0 0
        %1940 = vmatpush1.bf16.msra.mxu0 0
        %1941 = vmatprep.subr.bf16.mxu0 0
        %1942 = vmatpush1.bf16.msra.mxu0 0
        %1943 = vmatprep.subr.bf16.mxu0 0
        %1944 = vmatpush1.bf16.msra.mxu0 0
        %1945 = vmatprep.subr.bf16.mxu0 0
        %1946 = vmatpush1.bf16.msra.mxu0 0
        %1947 = vmatprep.subr.bf16.mxu0 0
        %1948 = vmatpush1.bf16.msra.mxu0 0
        %1949 = vmatprep.subr.bf16.mxu0 0
        %1950 = vmatpush1.bf16.msra.mxu0 0
        %1951 = vmatprep.mubr.bf16.mxu0 0
        %1952 = vmatmul.mubr.bf16.gmra.mrb[0].mxu0 %v1516
        %v1953 = vpop.f32.mrb[0].mxu0
        %v1954 = vadd.f32 %v1913, %v1953
        %v1955 = vpop.f32.mrb[0].mxu0
        %v1956 = vpop.f32.mrb[0].mxu0
        %v1957 = vadd.f32 %v1916, %v1956
        %v1958 = vpop.f32.mrb[0].mxu0
        %1959 = vdwg.mxu0
        %s1960 = scalar_lea.vmem [#allocation2], 320
        %v1961 = vld [vmem:[%s1960] sm:$0xf]
        %v1962 = vld [vmem:[%s1960 + $0x4] sm:$0xf]
        %v1963 = vld [vmem:[%s1960 + $0x8] sm:$0xf]
        %v1964 = vld [vmem:[%s1960 + $0xc] sm:$0xf]
        %v1965 = vld [vmem:[%s1960 + $0x10] sm:$0xf]
        %v1966 = vld [vmem:[%s1960 + $0x14] sm:$0xf]
        %v1967 = vld [vmem:[%s1960 + $0x18] sm:$0xf]
        %v1968 = vld [vmem:[%s1960 + $0x1c] sm:$0xf]
        %v1969 = vld [vmem:[%s1960 + $0x20] sm:$0xf]
        %v1970 = vld [vmem:[%s1960 + $0x24] sm:$0xf]
        %v1971 = vld [vmem:[%s1960 + $0x28] sm:$0xf]
        %v1972 = vld [vmem:[%s1960 + $0x2c] sm:$0xf]
        %v1973 = vld [vmem:[%s1960 + $0x30] sm:$0xf]
        %v1974 = vld [vmem:[%s1960 + $0x34] sm:$0xf]
        %v1975 = vld [vmem:[%s1960 + $0x38] sm:$0xf]
        %v1976 = vld [vmem:[%s1960 + $0x3c] sm:$0xf]
        %v1977 = vld [vmem:[%s1960 + $0x40] sm:$0xf]
        %v1978 = vld [vmem:[%s1960 + $0x44] sm:$0xf]
        %v1979 = vld [vmem:[%s1960 + $0x48] sm:$0xf]
        %v1980 = vld [vmem:[%s1960 + $0x4c] sm:$0xf]
        %v1981 = vld [vmem:[%s1960 + $0x50] sm:$0xf]
        %v1982 = vld [vmem:[%s1960 + $0x54] sm:$0xf]
        %v1983 = vld [vmem:[%s1960 + $0x58] sm:$0xf]
        %v1984 = vld [vmem:[%s1960 + $0x5c] sm:$0xf]
        %v1985 = vld [vmem:[%s1960 + $0x60] sm:$0xf]
        %v1986 = vld [vmem:[%s1960 + $0x64] sm:$0xf]
        %v1987 = vld [vmem:[%s1960 + $0x68] sm:$0xf]
        %v1988 = vld [vmem:[%s1960 + $0x6c] sm:$0xf]
        %v1989 = vld [vmem:[%s1960 + $0x70] sm:$0xf]
        %v1990 = vld [vmem:[%s1960 + $0x74] sm:$0xf]
        %v1991 = vld [vmem:[%s1960 + $0x78] sm:$0xf]
        %v1992 = vld [vmem:[%s1960 + $0x7c] sm:$0xf]
        %v1993 = vld [vmem:[%s1960 + $0x80] sm:$0xf]
        %v1994 = vld [vmem:[%s1960 + $0x84] sm:$0xf]
        %v1995 = vld [vmem:[%s1960 + $0x88] sm:$0xf]
        %v1996 = vld [vmem:[%s1960 + $0x8c] sm:$0xf]
        %v1997 = vld [vmem:[%s1960 + $0x90] sm:$0xf]
        %v1998 = vld [vmem:[%s1960 + $0x94] sm:$0xf]
        %v1999 = vld [vmem:[%s1960 + $0x98] sm:$0xf]
        %v2000 = vld [vmem:[%s1960 + $0x9c] sm:$0xf]
        %v2001 = vld [vmem:[%s1960 + $0xa0] sm:$0xf]
        %v2002 = vld [vmem:[%s1960 + $0xa4] sm:$0xf]
        %v2003 = vld [vmem:[%s1960 + $0xa8] sm:$0xf]
        %v2004 = vld [vmem:[%s1960 + $0xac] sm:$0xf]
        %v2005 = vld [vmem:[%s1960 + $0xb0] sm:$0xf]
        %v2006 = vld [vmem:[%s1960 + $0xb4] sm:$0xf]
        %v2007 = vld [vmem:[%s1960 + $0xb8] sm:$0xf]
        %v2008 = vld [vmem:[%s1960 + $0xbc] sm:$0xf]
        %v2009 = vld [vmem:[%s1960 + $0xc0] sm:$0xf]
        %v2010 = vld [vmem:[%s1960 + $0xc4] sm:$0xf]
        %v2011 = vld [vmem:[%s1960 + $0xc8] sm:$0xf]
        %v2012 = vld [vmem:[%s1960 + $0xcc] sm:$0xf]
        %v2013 = vld [vmem:[%s1960 + $0xd0] sm:$0xf]
        %v2014 = vld [vmem:[%s1960 + $0xd4] sm:$0xf]
        %v2015 = vld [vmem:[%s1960 + $0xd8] sm:$0xf]
        %v2016 = vld [vmem:[%s1960 + $0xdc] sm:$0xf]
        %v2017 = vld [vmem:[%s1960 + $0xe0] sm:$0xf]
        %v2018 = vld [vmem:[%s1960 + $0xe4] sm:$0xf]
        %v2019 = vld [vmem:[%s1960 + $0xe8] sm:$0xf]
        %v2020 = vld [vmem:[%s1960 + $0xec] sm:$0xf]
        %v2021 = vld [vmem:[%s1960 + $0xf0] sm:$0xf]
        %v2022 = vld [vmem:[%s1960 + $0xf4] sm:$0xf]
        %v2023 = vld [vmem:[%s1960 + $0xf8] sm:$0xf]
        %v2024 = vld [vmem:[%s1960 + $0xfc] sm:$0xf]
        %v2025 = vld [vmem:[%s1960 + $0x100] sm:$0xf]
        %v2026 = vld [vmem:[%s1960 + $0x104] sm:$0xf]
        %v2027 = vld [vmem:[%s1960 + $0x108] sm:$0xf]
        %v2028 = vld [vmem:[%s1960 + $0x10c] sm:$0xf]
        %v2029 = vld [vmem:[%s1960 + $0x110] sm:$0xf]
        %v2030 = vld [vmem:[%s1960 + $0x114] sm:$0xf]
        %v2031 = vld [vmem:[%s1960 + $0x118] sm:$0xf]
        %v2032 = vld [vmem:[%s1960 + $0x11c] sm:$0xf]
        %v2033 = vld [vmem:[%s1960 + $0x120] sm:$0xf]
        %v2034 = vld [vmem:[%s1960 + $0x124] sm:$0xf]
        %v2035 = vld [vmem:[%s1960 + $0x128] sm:$0xf]
        %v2036 = vld [vmem:[%s1960 + $0x12c] sm:$0xf]
        %v2037 = vld [vmem:[%s1960 + $0x130] sm:$0xf]
        %v2038 = vld [vmem:[%s1960 + $0x134] sm:$0xf]
        %v2039 = vld [vmem:[%s1960 + $0x138] sm:$0xf]
        %v2040 = vld [vmem:[%s1960 + $0x13c] sm:$0xf]
        %v2121 = vunpack.c.l.b16 %v1961
        %v2122 = vunpack.c.l.b16 %v1962
        %v2123 = vunpack.c.l.b16 %v1963
        %v2124 = vunpack.c.l.b16 %v1964
        %v2125 = vunpack.c.l.b16 %v1965
        %v2126 = vunpack.c.l.b16 %v1966
        %v2127 = vunpack.c.l.b16 %v1967
        %v2128 = vunpack.c.l.b16 %v1968
        %v2129 = vunpack.c.l.b16 %v1969
        %v2130 = vunpack.c.l.b16 %v1970
        %v2131 = vunpack.c.l.b16 %v1971
        %v2132 = vunpack.c.l.b16 %v1972
        %v2133 = vunpack.c.l.b16 %v1973
        %v2134 = vunpack.c.l.b16 %v1974
        %v2135 = vunpack.c.l.b16 %v1975
        %v2136 = vunpack.c.l.b16 %v1976
        %v2137 = vunpack.c.l.b16 %v1977
        %v2138 = vunpack.c.l.b16 %v1978
        %v2139 = vunpack.c.l.b16 %v1979
        %v2140 = vunpack.c.l.b16 %v1980
        %v2141 = vunpack.c.l.b16 %v1981
        %v2142 = vunpack.c.l.b16 %v1982
        %v2143 = vunpack.c.l.b16 %v1983
        %v2144 = vunpack.c.l.b16 %v1984
        %v2145 = vunpack.c.l.b16 %v1985
        %v2146 = vunpack.c.l.b16 %v1986
        %v2147 = vunpack.c.l.b16 %v1987
        %v2148 = vunpack.c.l.b16 %v1988
        %v2149 = vunpack.c.l.b16 %v1989
        %v2150 = vunpack.c.l.b16 %v1990
        %v2151 = vunpack.c.l.b16 %v1991
        %v2152 = vunpack.c.l.b16 %v1992
        %v2153 = vunpack.c.l.b16 %v1993
        %v2154 = vunpack.c.l.b16 %v1994
        %v2155 = vunpack.c.l.b16 %v1995
        %v2156 = vunpack.c.l.b16 %v1996
        %v2157 = vunpack.c.l.b16 %v1997
        %v2158 = vunpack.c.l.b16 %v1998
        %v2159 = vunpack.c.l.b16 %v1999
        %v2160 = vunpack.c.l.b16 %v2000
        %v2161 = vunpack.c.l.b16 %v2001
        %v2162 = vunpack.c.l.b16 %v2002
        %v2163 = vunpack.c.l.b16 %v2003
        %v2164 = vunpack.c.l.b16 %v2004
        %v2165 = vunpack.c.l.b16 %v2005
        %v2166 = vunpack.c.l.b16 %v2006
        %v2167 = vunpack.c.l.b16 %v2007
        %v2168 = vunpack.c.l.b16 %v2008
        %v2169 = vunpack.c.l.b16 %v2009
        %v2170 = vunpack.c.l.b16 %v2010
        %v2171 = vunpack.c.l.b16 %v2011
        %v2172 = vunpack.c.l.b16 %v2012
        %v2173 = vunpack.c.l.b16 %v2013
        %v2174 = vunpack.c.l.b16 %v2014
        %v2175 = vunpack.c.l.b16 %v2015
        %v2176 = vunpack.c.l.b16 %v2016
        %v2177 = vunpack.c.l.b16 %v2017
        %v2178 = vunpack.c.l.b16 %v2018
        %v2179 = vunpack.c.l.b16 %v2019
        %v2180 = vunpack.c.l.b16 %v2020
        %v2181 = vunpack.c.l.b16 %v2021
        %v2182 = vunpack.c.l.b16 %v2022
        %v2183 = vunpack.c.l.b16 %v2023
        %v2184 = vunpack.c.l.b16 %v2024
        %v2185 = vunpack.c.l.b16 %v2025
        %v2186 = vunpack.c.l.b16 %v2026
        %v2187 = vunpack.c.l.b16 %v2027
        %v2188 = vunpack.c.l.b16 %v2028
        %v2189 = vunpack.c.l.b16 %v2029
        %v2190 = vunpack.c.l.b16 %v2030
        %v2191 = vunpack.c.l.b16 %v2031
        %v2192 = vunpack.c.l.b16 %v2032
        %v2193 = vunpack.c.l.b16 %v2033
        %v2194 = vunpack.c.l.b16 %v2034
        %v2195 = vunpack.c.l.b16 %v2035
        %v2196 = vunpack.c.l.b16 %v2036
        %v2197 = vunpack.c.l.b16 %v2037
        %v2198 = vunpack.c.l.b16 %v2038
        %v2199 = vunpack.c.l.b16 %v2039
        %v2200 = vunpack.c.l.b16 %v2040
        %v2201 = vpack.c.b16 %v2122, %v2121
        %v2202 = vpack.c.b16 %v2124, %v2123
        %v2203 = vpack.c.b16 %v2126, %v2125
        %v2204 = vpack.c.b16 %v2128, %v2127
        %v2205 = vpack.c.b16 %v2130, %v2129
        %v2206 = vpack.c.b16 %v2132, %v2131
        %v2207 = vpack.c.b16 %v2134, %v2133
        %v2208 = vpack.c.b16 %v2136, %v2135
        %v2209 = vpack.c.b16 %v2138, %v2137
        %v2210 = vpack.c.b16 %v2140, %v2139
        %v2211 = vpack.c.b16 %v2142, %v2141
        %v2212 = vpack.c.b16 %v2144, %v2143
        %v2213 = vpack.c.b16 %v2146, %v2145
        %v2214 = vpack.c.b16 %v2148, %v2147
        %v2215 = vpack.c.b16 %v2150, %v2149
        %v2216 = vpack.c.b16 %v2152, %v2151
        %v2217 = vpack.c.b16 %v2154, %v2153
        %v2218 = vpack.c.b16 %v2156, %v2155
        %v2219 = vpack.c.b16 %v2158, %v2157
        %v2220 = vpack.c.b16 %v2160, %v2159
        %v2221 = vpack.c.b16 %v2162, %v2161
        %v2222 = vpack.c.b16 %v2164, %v2163
        %v2223 = vpack.c.b16 %v2166, %v2165
        %v2224 = vpack.c.b16 %v2168, %v2167
        %v2225 = vpack.c.b16 %v2170, %v2169
        %v2226 = vpack.c.b16 %v2172, %v2171
        %v2227 = vpack.c.b16 %v2174, %v2173
        %v2228 = vpack.c.b16 %v2176, %v2175
        %v2229 = vpack.c.b16 %v2178, %v2177
        %v2230 = vpack.c.b16 %v2180, %v2179
        %v2231 = vpack.c.b16 %v2182, %v2181
        %v2232 = vpack.c.b16 %v2184, %v2183
        %v2233 = vpack.c.b16 %v2186, %v2185
        %v2234 = vpack.c.b16 %v2188, %v2187
        %v2235 = vpack.c.b16 %v2190, %v2189
        %v2236 = vpack.c.b16 %v2192, %v2191
        %v2237 = vpack.c.b16 %v2194, %v2193
        %v2238 = vpack.c.b16 %v2196, %v2195
        %v2239 = vpack.c.b16 %v2198, %v2197
        %v2240 = vpack.c.b16 %v2200, %v2199
        %2281 = vmatprep.subr.bf16.mxu0 0
        %2282 = vmatpush1.bf16.msra.mxu0 %v2201
        %2283 = vmatprep.subr.bf16.mxu0 0
        %2284 = vmatpush1.bf16.msra.mxu0 %v2202
        %2285 = vmatprep.subr.bf16.mxu0 0
        %2286 = vmatpush1.bf16.msra.mxu0 %v2203
        %2287 = vmatprep.subr.bf16.mxu0 0
        %2288 = vmatpush1.bf16.msra.mxu0 %v2204
        %2289 = vmatprep.subr.bf16.mxu0 0
        %2290 = vmatpush1.bf16.msra.mxu0 %v2205
        %2291 = vmatprep.subr.bf16.mxu0 0
        %2292 = vmatpush1.bf16.msra.mxu0 %v2206
        %2293 = vmatprep.subr.bf16.mxu0 0
        %2294 = vmatpush1.bf16.msra.mxu0 %v2207
        %2295 = vmatprep.subr.bf16.mxu0 0
        %2296 = vmatpush1.bf16.msra.mxu0 %v2208
        %2297 = vmatprep.subr.bf16.mxu0 0
        %2298 = vmatpush1.bf16.msra.mxu0 %v2209
        %2299 = vmatprep.subr.bf16.mxu0 0
        %2300 = vmatpush1.bf16.msra.mxu0 %v2210
        %2301 = vmatprep.subr.bf16.mxu0 0
        %2302 = vmatpush1.bf16.msra.mxu0 %v2211
        %2303 = vmatprep.subr.bf16.mxu0 0
        %2304 = vmatpush1.bf16.msra.mxu0 %v2212
        %2305 = vmatprep.subr.bf16.mxu0 0
        %2306 = vmatpush1.bf16.msra.mxu0 %v2213
        %2307 = vmatprep.subr.bf16.mxu0 0
        %2308 = vmatpush1.bf16.msra.mxu0 %v2214
        %2309 = vmatprep.subr.bf16.mxu0 0
        %2310 = vmatpush1.bf16.msra.mxu0 %v2215
        %2311 = vmatprep.subr.bf16.mxu0 0
        %2312 = vmatpush1.bf16.msra.mxu0 %v2216
        %2313 = vmatprep.mubr.bf16.mxu0 %v1513
        %2314 = vmatmul.mubr.bf16.gmra.mrb[0].mxu0 %v1512
        %v2315 = vpop.f32.mrb[0].mxu0
        %v2316 = vadd.f32 0.0, %v2315
        %v2317 = vpop.f32.mrb[0].mxu0
        %v2318 = vpop.f32.mrb[0].mxu0
        %v2319 = vadd.f32 0.0, %v2318
        %v2320 = vpop.f32.mrb[0].mxu0
        %2321 = vdwg.mxu0
        %2322 = vmatprep.subr.bf16.mxu0 0
        %2323 = vmatpush1.bf16.msra.mxu0 %v2217
        %2324 = vmatprep.subr.bf16.mxu0 0
        %2325 = vmatpush1.bf16.msra.mxu0 %v2218
        %2326 = vmatprep.subr.bf16.mxu0 0
        %2327 = vmatpush1.bf16.msra.mxu0 %v2219
        %2328 = vmatprep.subr.bf16.mxu0 0
        %2329 = vmatpush1.bf16.msra.mxu0 %v2220
        %2330 = vmatprep.subr.bf16.mxu0 0
        %2331 = vmatpush1.bf16.msra.mxu0 %v2221
        %2332 = vmatprep.subr.bf16.mxu0 0
        %2333 = vmatpush1.bf16.msra.mxu0 %v2222
        %2334 = vmatprep.subr.bf16.mxu0 0
        %2335 = vmatpush1.bf16.msra.mxu0 %v2223
        %2336 = vmatprep.subr.bf16.mxu0 0
        %2337 = vmatpush1.bf16.msra.mxu0 %v2224
        %2338 = vmatprep.subr.bf16.mxu0 0
        %2339 = vmatpush1.bf16.msra.mxu0 %v2225
        %2340 = vmatprep.subr.bf16.mxu0 0
        %2341 = vmatpush1.bf16.msra.mxu0 %v2226
        %2342 = vmatprep.subr.bf16.mxu0 0
        %2343 = vmatpush1.bf16.msra.mxu0 %v2227
        %2344 = vmatprep.subr.bf16.mxu0 0
        %2345 = vmatpush1.bf16.msra.mxu0 %v2228
        %2346 = vmatprep.subr.bf16.mxu0 0
        %2347 = vmatpush1.bf16.msra.mxu0 %v2229
        %2348 = vmatprep.subr.bf16.mxu0 0
        %2349 = vmatpush1.bf16.msra.mxu0 %v2230
        %2350 = vmatprep.subr.bf16.mxu0 0
        %2351 = vmatpush1.bf16.msra.mxu0 %v2231
        %2352 = vmatprep.subr.bf16.mxu0 0
        %2353 = vmatpush1.bf16.msra.mxu0 %v2232
        %2354 = vmatprep.mubr.bf16.mxu0 %v1515
        %2355 = vmatmul.mubr.bf16.gmra.mrb[0].mxu0 %v1514
        %v2356 = vpop.f32.mrb[0].mxu0
        %v2357 = vadd.f32 %v2316, %v2356
        %v2358 = vpop.f32.mrb[0].mxu0
        %v2359 = vpop.f32.mrb[0].mxu0
        %v2360 = vadd.f32 %v2319, %v2359
        %v2361 = vpop.f32.mrb[0].mxu0
        %2362 = vdwg.mxu0
        %2363 = vmatprep.subr.bf16.mxu0 0
        %2364 = vmatpush1.bf16.msra.mxu0 %v2233
        %2365 = vmatprep.subr.bf16.mxu0 0
        %2366 = vmatpush1.bf16.msra.mxu0 %v2234
        %2367 = vmatprep.subr.bf16.mxu0 0
        %2368 = vmatpush1.bf16.msra.mxu0 %v2235
        %2369 = vmatprep.subr.bf16.mxu0 0
        %2370 = vmatpush1.bf16.msra.mxu0 %v2236
        %2371 = vmatprep.subr.bf16.mxu0 0
        %2372 = vmatpush1.bf16.msra.mxu0 %v2237
        %2373 = vmatprep.subr.bf16.mxu0 0
        %2374 = vmatpush1.bf16.msra.mxu0 %v2238
        %2375 = vmatprep.subr.bf16.mxu0 0
        %2376 = vmatpush1.bf16.msra.mxu0 %v2239
        %2377 = vmatprep.subr.bf16.mxu0 0
        %2378 = vmatpush1.bf16.msra.mxu0 %v2240
        %2379 = vmatprep.subr.bf16.mxu0 0
        %2380 = vmatpush1.bf16.msra.mxu0 0
        %2381 = vmatprep.subr.bf16.mxu0 0
        %2382 = vmatpush1.bf16.msra.mxu0 0
        %2383 = vmatprep.subr.bf16.mxu0 0
        %2384 = vmatpush1.bf16.msra.mxu0 0
        %2385 = vmatprep.subr.bf16.mxu0 0
        %2386 = vmatpush1.bf16.msra.mxu0 0
        %2387 = vmatprep.subr.bf16.mxu0 0
        %2388 = vmatpush1.bf16.msra.mxu0 0
        %2389 = vmatprep.subr.bf16.mxu0 0
        %2390 = vmatpush1.bf16.msra.mxu0 0
        %2391 = vmatprep.subr.bf16.mxu0 0
        %2392 = vmatpush1.bf16.msra.mxu0 0
        %2393 = vmatprep.subr.bf16.mxu0 0
        %2394 = vmatpush1.bf16.msra.mxu0 0
        %2395 = vmatprep.mubr.bf16.mxu0 0
        %2396 = vmatmul.mubr.bf16.gmra.mrb[0].mxu0 %v1516
        %v2397 = vpop.f32.mrb[0].mxu0
        %v2398 = vadd.f32 %v2357, %v2397
        %v2399 = vpop.f32.mrb[0].mxu0
        %v2400 = vpop.f32.mrb[0].mxu0
        %v2401 = vadd.f32 %v2360, %v2400
        %v2402 = vpop.f32.mrb[0].mxu0
        %2403 = vdwg.mxu0
        %v2404 = vmax.f32 %v1954, %v2398
        %v2405 = vmax.f32 %v1957, %v2401
        %v2407 = vrot.slane %v2404, 1
        %v2409 = vmax.f32 %v2404, %v2407
        %v2411 = vrot.slane %v2405, 1
        %v2413 = vmax.f32 %v2405, %v2411
        %v2415 = vrot.slane %v2409, 1
        %v2417 = vrot.slane %v2409, 2
        %v2419 = vrot.slane %v2409, 3
        %v2422 = vrot.slane %v2413, 4
        %v2424 = vsel %vm1464, %v2409, %v2415
        %v2425 = vsel %vm1466, %v2424, %v2417
        %v2426 = vsel %vm1468, %v2425, %v2419
        %v2427 = vsel %vm459, %v2426, %v2422
        %v2428 = vld [vmem:[%s4] sm:$0x1]
        %v2430 = vlaneseq
        %v2431 = vshrl.u32 %v2430, 7
        %v2432 = vsub.s32 0, %v2431
        %v2433 = vrot.slane %v2428, %v2432
        %v2435 = vadd.f32 %v2427, %v2433
        %v2436 = vmax.f32 %v2435, 0.0
        %v2438 = vrot.slane %v2436, 1
        %v2440 = vrot.slane %v2436, 2
        %v2442 = vrot.slane %v2436, 3
        %v2444 = vrot.slane %v2436, 4
        %v2446 = vpack.c.bf16 %v2436, %v2436
        %v2447 = vpack.c.bf16 %v2438, %v2438
        %v2448 = vpack.c.bf16 %v2440, %v2440
        %v2449 = vpack.c.bf16 %v2442, %v2442
        %v2450 = vpack.c.bf16 %v2444, %v2444
        %v2451 = vld [vmem:[#allocation5] sm:$0xf]
        %v2452 = vld [vmem:[#allocation5 + $0x4] sm:$0xf]
        %v2453 = vld [vmem:[#allocation5 + $0x8] sm:$0xf]
        %v2454 = vld [vmem:[#allocation5 + $0xc] sm:$0xf]
        %v2455 = vld [vmem:[#allocation5 + $0x10] sm:$0xf]
        %v2456 = vld [vmem:[#allocation5 + $0x14] sm:$0xf]
        %v2457 = vld [vmem:[#allocation5 + $0x18] sm:$0xf]
        %v2458 = vld [vmem:[#allocation5 + $0x1c] sm:$0xf]
        %v2459 = vld [vmem:[#allocation5 + $0x20] sm:$0xf]
        %v2460 = vld [vmem:[#allocation5 + $0x24] sm:$0xf]
        %v2461 = vld [vmem:[#allocation5 + $0x28] sm:$0xf]
        %v2462 = vld [vmem:[#allocation5 + $0x2c] sm:$0xf]
        %v2463 = vld [vmem:[#allocation5 + $0x30] sm:$0xf]
        %v2464 = vld [vmem:[#allocation5 + $0x34] sm:$0xf]
        %v2465 = vld [vmem:[#allocation5 + $0x38] sm:$0xf]
        %v2466 = vld [vmem:[#allocation5 + $0x3c] sm:$0xf]
        %v2467 = vld [vmem:[#allocation5 + $0x40] sm:$0xf]
        %v2468 = vld [vmem:[#allocation5 + $0x44] sm:$0xf]
        %v2469 = vld [vmem:[#allocation5 + $0x48] sm:$0xf]
        %v2470 = vld [vmem:[#allocation5 + $0x4c] sm:$0xf]
        %v2471 = vld [vmem:[#allocation5 + $0x50] sm:$0xf]
        %v2472 = vld [vmem:[#allocation5 + $0x54] sm:$0xf]
        %v2473 = vld [vmem:[#allocation5 + $0x58] sm:$0xf]
        %v2474 = vld [vmem:[#allocation5 + $0x5c] sm:$0xf]
        %v2475 = vld [vmem:[#allocation5 + $0x60] sm:$0xf]
        %v2476 = vld [vmem:[#allocation5 + $0x64] sm:$0xf]
        %v2477 = vld [vmem:[#allocation5 + $0x68] sm:$0xf]
        %v2478 = vld [vmem:[#allocation5 + $0x6c] sm:$0xf]
        %v2479 = vld [vmem:[#allocation5 + $0x70] sm:$0xf]
        %v2480 = vld [vmem:[#allocation5 + $0x74] sm:$0xf]
        %v2481 = vld [vmem:[#allocation5 + $0x78] sm:$0xf]
        %v2482 = vld [vmem:[#allocation5 + $0x7c] sm:$0xf]
        %v2483 = vld [vmem:[#allocation5 + $0x80] sm:$0xf]
        %v2484 = vld [vmem:[#allocation5 + $0x84] sm:$0xf]
        %v2485 = vld [vmem:[#allocation5 + $0x88] sm:$0xf]
        %v2486 = vld [vmem:[#allocation5 + $0x8c] sm:$0xf]
        %v2487 = vld [vmem:[#allocation5 + $0x90] sm:$0xf]
        %v2488 = vld [vmem:[#allocation5 + $0x94] sm:$0xf]
        %v2489 = vld [vmem:[#allocation5 + $0x98] sm:$0xf]
        %v2490 = vld [vmem:[#allocation5 + $0x9c] sm:$0xf]
        %v2491 = vld [vmem:[#allocation5 + $0xa0] sm:$0xf]
        %v2492 = vld [vmem:[#allocation5 + $0xa4] sm:$0xf]
        %v2493 = vld [vmem:[#allocation5 + $0xa8] sm:$0xf]
        %v2494 = vld [vmem:[#allocation5 + $0xac] sm:$0xf]
        %v2495 = vld [vmem:[#allocation5 + $0xb0] sm:$0xf]
        %v2496 = vld [vmem:[#allocation5 + $0xb4] sm:$0xf]
        %v2497 = vld [vmem:[#allocation5 + $0xb8] sm:$0xf]
        %v2498 = vld [vmem:[#allocation5 + $0xbc] sm:$0xf]
        %v2499 = vld [vmem:[#allocation5 + $0xc0] sm:$0xf]
        %v2500 = vld [vmem:[#allocation5 + $0xc4] sm:$0xf]
        %v2501 = vld [vmem:[#allocation5 + $0xc8] sm:$0xf]
        %v2502 = vld [vmem:[#allocation5 + $0xcc] sm:$0xf]
        %v2503 = vld [vmem:[#allocation5 + $0xd0] sm:$0xf]
        %v2504 = vld [vmem:[#allocation5 + $0xd4] sm:$0xf]
        %v2505 = vld [vmem:[#allocation5 + $0xd8] sm:$0xf]
        %v2506 = vld [vmem:[#allocation5 + $0xdc] sm:$0xf]
        %v2507 = vld [vmem:[#allocation5 + $0xe0] sm:$0xf]
        %v2508 = vld [vmem:[#allocation5 + $0xe4] sm:$0xf]
        %v2509 = vld [vmem:[#allocation5 + $0xe8] sm:$0xf]
        %v2510 = vld [vmem:[#allocation5 + $0xec] sm:$0xf]
        %v2511 = vld [vmem:[#allocation5 + $0xf0] sm:$0xf]
        %v2512 = vld [vmem:[#allocation5 + $0xf4] sm:$0xf]
        %v2513 = vld [vmem:[#allocation5 + $0xf8] sm:$0xf]
        %v2514 = vld [vmem:[#allocation5 + $0xfc] sm:$0xf]
        %v2515 = vld [vmem:[#allocation5 + $0x100] sm:$0xf]
        %v2516 = vld [vmem:[#allocation5 + $0x104] sm:$0xf]
        %v2517 = vld [vmem:[#allocation5 + $0x108] sm:$0xf]
        %v2518 = vld [vmem:[#allocation5 + $0x10c] sm:$0xf]
        %v2519 = vld [vmem:[#allocation5 + $0x110] sm:$0xf]
        %v2520 = vld [vmem:[#allocation5 + $0x114] sm:$0xf]
        %v2521 = vld [vmem:[#allocation5 + $0x118] sm:$0xf]
        %v2522 = vld [vmem:[#allocation5 + $0x11c] sm:$0xf]
        %v2523 = vld [vmem:[#allocation5 + $0x120] sm:$0xf]
        %v2524 = vld [vmem:[#allocation5 + $0x124] sm:$0xf]
        %v2525 = vld [vmem:[#allocation5 + $0x128] sm:$0xf]
        %v2526 = vld [vmem:[#allocation5 + $0x12c] sm:$0xf]
        %v2527 = vld [vmem:[#allocation5 + $0x130] sm:$0xf]
        %v2528 = vld [vmem:[#allocation5 + $0x134] sm:$0xf]
        %v2529 = vld [vmem:[#allocation5 + $0x138] sm:$0xf]
        %v2530 = vld [vmem:[#allocation5 + $0x13c] sm:$0xf]
        %v2531 = vld [vmem:[%s6] sm:$0x1]
        %v2612 = vunpack.c.l.b16 %v2451
        %v2613 = vunpack.c.l.b16 %v2452
        %v2614 = vunpack.c.l.b16 %v2453
        %v2615 = vunpack.c.l.b16 %v2454
        %v2616 = vunpack.c.l.b16 %v2455
        %v2617 = vunpack.c.l.b16 %v2456
        %v2618 = vunpack.c.l.b16 %v2457
        %v2619 = vunpack.c.l.b16 %v2458
        %v2620 = vunpack.c.l.b16 %v2459
        %v2621 = vunpack.c.l.b16 %v2460
        %v2622 = vunpack.c.l.b16 %v2461
        %v2623 = vunpack.c.l.b16 %v2462
        %v2624 = vunpack.c.l.b16 %v2463
        %v2625 = vunpack.c.l.b16 %v2464
        %v2626 = vunpack.c.l.b16 %v2465
        %v2627 = vunpack.c.l.b16 %v2466
        %v2628 = vunpack.c.l.b16 %v2467
        %v2629 = vunpack.c.l.b16 %v2468
        %v2630 = vunpack.c.l.b16 %v2469
        %v2631 = vunpack.c.l.b16 %v2470
        %v2632 = vunpack.c.l.b16 %v2471
        %v2633 = vunpack.c.l.b16 %v2472
        %v2634 = vunpack.c.l.b16 %v2473
        %v2635 = vunpack.c.l.b16 %v2474
        %v2636 = vunpack.c.l.b16 %v2475
        %v2637 = vunpack.c.l.b16 %v2476
        %v2638 = vunpack.c.l.b16 %v2477
        %v2639 = vunpack.c.l.b16 %v2478
        %v2640 = vunpack.c.l.b16 %v2479
        %v2641 = vunpack.c.l.b16 %v2480
        %v2642 = vunpack.c.l.b16 %v2481
        %v2643 = vunpack.c.l.b16 %v2482
        %v2644 = vunpack.c.l.b16 %v2483
        %v2645 = vunpack.c.l.b16 %v2484
        %v2646 = vunpack.c.l.b16 %v2485
        %v2647 = vunpack.c.l.b16 %v2486
        %v2648 = vunpack.c.l.b16 %v2487
        %v2649 = vunpack.c.l.b16 %v2488
        %v2650 = vunpack.c.l.b16 %v2489
        %v2651 = vunpack.c.l.b16 %v2490
        %v2652 = vunpack.c.l.b16 %v2491
        %v2653 = vunpack.c.l.b16 %v2492
        %v2654 = vunpack.c.l.b16 %v2493
        %v2655 = vunpack.c.l.b16 %v2494
        %v2656 = vunpack.c.l.b16 %v2495
        %v2657 = vunpack.c.l.b16 %v2496
        %v2658 = vunpack.c.l.b16 %v2497
        %v2659 = vunpack.c.l.b16 %v2498
        %v2660 = vunpack.c.l.b16 %v2499
        %v2661 = vunpack.c.l.b16 %v2500
        %v2662 = vunpack.c.l.b16 %v2501
        %v2663 = vunpack.c.l.b16 %v2502
        %v2664 = vunpack.c.l.b16 %v2503
        %v2665 = vunpack.c.l.b16 %v2504
        %v2666 = vunpack.c.l.b16 %v2505
        %v2667 = vunpack.c.l.b16 %v2506
        %v2668 = vunpack.c.l.b16 %v2507
        %v2669 = vunpack.c.l.b16 %v2508
        %v2670 = vunpack.c.l.b16 %v2509
        %v2671 = vunpack.c.l.b16 %v2510
        %v2672 = vunpack.c.l.b16 %v2511
        %v2673 = vunpack.c.l.b16 %v2512
        %v2674 = vunpack.c.l.b16 %v2513
        %v2675 = vunpack.c.l.b16 %v2514
        %v2676 = vunpack.c.l.b16 %v2515
        %v2677 = vunpack.c.l.b16 %v2516
        %v2678 = vunpack.c.l.b16 %v2517
        %v2679 = vunpack.c.l.b16 %v2518
        %v2680 = vunpack.c.l.b16 %v2519
        %v2681 = vunpack.c.l.b16 %v2520
        %v2682 = vunpack.c.l.b16 %v2521
        %v2683 = vunpack.c.l.b16 %v2522
        %v2684 = vunpack.c.l.b16 %v2523
        %v2685 = vunpack.c.l.b16 %v2524
        %v2686 = vunpack.c.l.b16 %v2525
        %v2687 = vunpack.c.l.b16 %v2526
        %v2688 = vunpack.c.l.b16 %v2527
        %v2689 = vunpack.c.l.b16 %v2528
        %v2690 = vunpack.c.l.b16 %v2529
        %v2691 = vunpack.c.l.b16 %v2530
        %v2692 = vpack.c.b16 %v2613, %v2612
        %v2693 = vpack.c.b16 %v2615, %v2614
        %v2694 = vpack.c.b16 %v2617, %v2616
        %v2695 = vpack.c.b16 %v2619, %v2618
        %v2696 = vpack.c.b16 %v2621, %v2620
        %v2697 = vpack.c.b16 %v2623, %v2622
        %v2698 = vpack.c.b16 %v2625, %v2624
        %v2699 = vpack.c.b16 %v2627, %v2626
        %v2700 = vpack.c.b16 %v2629, %v2628
        %v2701 = vpack.c.b16 %v2631, %v2630
        %v2702 = vpack.c.b16 %v2633, %v2632
        %v2703 = vpack.c.b16 %v2635, %v2634
        %v2704 = vpack.c.b16 %v2637, %v2636
        %v2705 = vpack.c.b16 %v2639, %v2638
        %v2706 = vpack.c.b16 %v2641, %v2640
        %v2707 = vpack.c.b16 %v2643, %v2642
        %v2708 = vpack.c.b16 %v2645, %v2644
        %v2709 = vpack.c.b16 %v2647, %v2646
        %v2710 = vpack.c.b16 %v2649, %v2648
        %v2711 = vpack.c.b16 %v2651, %v2650
        %v2712 = vpack.c.b16 %v2653, %v2652
        %v2713 = vpack.c.b16 %v2655, %v2654
        %v2714 = vpack.c.b16 %v2657, %v2656
        %v2715 = vpack.c.b16 %v2659, %v2658
        %v2716 = vpack.c.b16 %v2661, %v2660
        %v2717 = vpack.c.b16 %v2663, %v2662
        %v2718 = vpack.c.b16 %v2665, %v2664
        %v2719 = vpack.c.b16 %v2667, %v2666
        %v2720 = vpack.c.b16 %v2669, %v2668
        %v2721 = vpack.c.b16 %v2671, %v2670
        %v2722 = vpack.c.b16 %v2673, %v2672
        %v2723 = vpack.c.b16 %v2675, %v2674
        %v2724 = vpack.c.b16 %v2677, %v2676
        %v2725 = vpack.c.b16 %v2679, %v2678
        %v2726 = vpack.c.b16 %v2681, %v2680
        %v2727 = vpack.c.b16 %v2683, %v2682
        %v2728 = vpack.c.b16 %v2685, %v2684
        %v2729 = vpack.c.b16 %v2687, %v2686
        %v2730 = vpack.c.b16 %v2689, %v2688
        %v2731 = vpack.c.b16 %v2691, %v2690
        %2772 = vmatprep.subr.bf16.mxu0 0
        %2773 = vmatpush1.bf16.msra.mxu0 %v2692
        %2774 = vmatprep.subr.bf16.mxu0 0
        %2775 = vmatpush1.bf16.msra.mxu0 %v2693
        %2776 = vmatprep.subr.bf16.mxu0 0
        %2777 = vmatpush1.bf16.msra.mxu0 %v2694
        %2778 = vmatprep.subr.bf16.mxu0 0
        %2779 = vmatpush1.bf16.msra.mxu0 %v2695
        %2780 = vmatprep.subr.bf16.mxu0 0
        %2781 = vmatpush1.bf16.msra.mxu0 %v2696
        %2782 = vmatprep.subr.bf16.mxu0 0
        %2783 = vmatpush1.bf16.msra.mxu0 %v2697
        %2784 = vmatprep.subr.bf16.mxu0 0
        %2785 = vmatpush1.bf16.msra.mxu0 %v2698
        %2786 = vmatprep.subr.bf16.mxu0 0
        %2787 = vmatpush1.bf16.msra.mxu0 %v2699
        %2788 = vmatprep.subr.bf16.mxu0 0
        %2789 = vmatpush1.bf16.msra.mxu0 %v2700
        %2790 = vmatprep.subr.bf16.mxu0 0
        %2791 = vmatpush1.bf16.msra.mxu0 %v2701
        %2792 = vmatprep.subr.bf16.mxu0 0
        %2793 = vmatpush1.bf16.msra.mxu0 %v2702
        %2794 = vmatprep.subr.bf16.mxu0 0
        %2795 = vmatpush1.bf16.msra.mxu0 %v2703
        %2796 = vmatprep.subr.bf16.mxu0 0
        %2797 = vmatpush1.bf16.msra.mxu0 %v2704
        %2798 = vmatprep.subr.bf16.mxu0 0
        %2799 = vmatpush1.bf16.msra.mxu0 %v2705
        %2800 = vmatprep.subr.bf16.mxu0 0
        %2801 = vmatpush1.bf16.msra.mxu0 %v2706
        %2802 = vmatprep.subr.bf16.mxu0 0
        %2803 = vmatpush1.bf16.msra.mxu0 %v2707
        %2804 = vmatprep.mubr.bf16.mxu0 %v2447
        %2805 = vmatmul.mubr.bf16.gmra.mrb[0].mxu0 %v2446
        %v2806 = vpop.f32.mrb[0].mxu0
        %v2807 = vadd.f32 %v2531, %v2806
        %v2808 = vpop.f32.mrb[0].mxu0
        %v2809 = vpop.f32.mrb[0].mxu0
        %v2810 = vpop.f32.mrb[0].mxu0
        %2811 = vdwg.mxu0
        %2812 = vmatprep.subr.bf16.mxu0 0
        %2813 = vmatpush1.bf16.msra.mxu0 %v2708
        %2814 = vmatprep.subr.bf16.mxu0 0
        %2815 = vmatpush1.bf16.msra.mxu0 %v2709
        %2816 = vmatprep.subr.bf16.mxu0 0
        %2817 = vmatpush1.bf16.msra.mxu0 %v2710
        %2818 = vmatprep.subr.bf16.mxu0 0
        %2819 = vmatpush1.bf16.msra.mxu0 %v2711
        %2820 = vmatprep.subr.bf16.mxu0 0
        %2821 = vmatpush1.bf16.msra.mxu0 %v2712
        %2822 = vmatprep.subr.bf16.mxu0 0
        %2823 = vmatpush1.bf16.msra.mxu0 %v2713
        %2824 = vmatprep.subr.bf16.mxu0 0
        %2825 = vmatpush1.bf16.msra.mxu0 %v2714
        %2826 = vmatprep.subr.bf16.mxu0 0
        %2827 = vmatpush1.bf16.msra.mxu0 %v2715
        %2828 = vmatprep.subr.bf16.mxu0 0
        %2829 = vmatpush1.bf16.msra.mxu0 %v2716
        %2830 = vmatprep.subr.bf16.mxu0 0
        %2831 = vmatpush1.bf16.msra.mxu0 %v2717
        %2832 = vmatprep.subr.bf16.mxu0 0
        %2833 = vmatpush1.bf16.msra.mxu0 %v2718
        %2834 = vmatprep.subr.bf16.mxu0 0
        %2835 = vmatpush1.bf16.msra.mxu0 %v2719
        %2836 = vmatprep.subr.bf16.mxu0 0
        %2837 = vmatpush1.bf16.msra.mxu0 %v2720
        %2838 = vmatprep.subr.bf16.mxu0 0
        %2839 = vmatpush1.bf16.msra.mxu0 %v2721
        %2840 = vmatprep.subr.bf16.mxu0 0
        %2841 = vmatpush1.bf16.msra.mxu0 %v2722
        %2842 = vmatprep.subr.bf16.mxu0 0
        %2843 = vmatpush1.bf16.msra.mxu0 %v2723
        %2844 = vmatprep.mubr.bf16.mxu0 %v2449
        %2845 = vmatmul.mubr.bf16.gmra.mrb[0].mxu0 %v2448
        %v2846 = vpop.f32.mrb[0].mxu0
        %v2847 = vadd.f32 %v2807, %v2846
        %v2848 = vpop.f32.mrb[0].mxu0
        %v2849 = vpop.f32.mrb[0].mxu0
        %v2850 = vpop.f32.mrb[0].mxu0
        %2851 = vdwg.mxu0
        %2852 = vmatprep.subr.bf16.mxu0 0
        %2853 = vmatpush1.bf16.msra.mxu0 %v2724
        %2854 = vmatprep.subr.bf16.mxu0 0
        %2855 = vmatpush1.bf16.msra.mxu0 %v2725
        %2856 = vmatprep.subr.bf16.mxu0 0
        %2857 = vmatpush1.bf16.msra.mxu0 %v2726
        %2858 = vmatprep.subr.bf16.mxu0 0
        %2859 = vmatpush1.bf16.msra.mxu0 %v2727
        %2860 = vmatprep.subr.bf16.mxu0 0
        %2861 = vmatpush1.bf16.msra.mxu0 %v2728
        %2862 = vmatprep.subr.bf16.mxu0 0
        %2863 = vmatpush1.bf16.msra.mxu0 %v2729
        %2864 = vmatprep.subr.bf16.mxu0 0
        %2865 = vmatpush1.bf16.msra.mxu0 %v2730
        %2866 = vmatprep.subr.bf16.mxu0 0
        %2867 = vmatpush1.bf16.msra.mxu0 %v2731
        %2868 = vmatprep.subr.bf16.mxu0 0
        %2869 = vmatpush1.bf16.msra.mxu0 0
        %2870 = vmatprep.subr.bf16.mxu0 0
        %2871 = vmatpush1.bf16.msra.mxu0 0
        %2872 = vmatprep.subr.bf16.mxu0 0
        %2873 = vmatpush1.bf16.msra.mxu0 0
        %2874 = vmatprep.subr.bf16.mxu0 0
        %2875 = vmatpush1.bf16.msra.mxu0 0
        %2876 = vmatprep.subr.bf16.mxu0 0
        %2877 = vmatpush1.bf16.msra.mxu0 0
        %2878 = vmatprep.subr.bf16.mxu0 0
        %2879 = vmatpush1.bf16.msra.mxu0 0
        %2880 = vmatprep.subr.bf16.mxu0 0
        %2881 = vmatpush1.bf16.msra.mxu0 0
        %2882 = vmatprep.subr.bf16.mxu0 0
        %2883 = vmatpush1.bf16.msra.mxu0 0
        %2884 = vmatprep.mubr.bf16.mxu0 0
        %2885 = vmatmul.mubr.bf16.gmra.mrb[0].mxu0 %v2450
        %v2886 = vpop.f32.mrb[0].mxu0
        %v2887 = vadd.f32 %v2847, %v2886
        %v2888 = vpop.f32.mrb[0].mxu0
        %v2889 = vpop.f32.mrb[0].mxu0
        %v2890 = vpop.f32.mrb[0].mxu0
        %2891 = vdwg.mxu0
        %v2892 = vmax.f32 %v2887, 0.0
        %v2893 = vpack.c.bf16 %v2892, %v2892
        %v2894 = vld [vmem:[%s7] sm:$0xf]
        %v2895 = vld [vmem:[%s7 + $0x4] sm:$0xf]
        %v2896 = vld [vmem:[%s7 + $0x8] sm:$0xf]
        %v2897 = vld [vmem:[%s7 + $0xc] sm:$0xf]
        %v2898 = vld [vmem:[%s7 + $0x10] sm:$0xf]
        %v2899 = vld [vmem:[%s7 + $0x14] sm:$0xf]
        %v2900 = vld [vmem:[%s7 + $0x18] sm:$0xf]
        %v2901 = vld [vmem:[%s7 + $0x1c] sm:$0xf]
        %v2902 = vld [vmem:[%s7 + $0x20] sm:$0xf]
        %v2903 = vld [vmem:[%s7 + $0x24] sm:$0xf]
        %v2904 = vld [vmem:[%s7 + $0x28] sm:$0xf]
        %v2905 = vld [vmem:[%s7 + $0x2c] sm:$0xf]
        %v2906 = vld [vmem:[%s7 + $0x30] sm:$0xf]
        %v2907 = vld [vmem:[%s7 + $0x34] sm:$0xf]
        %v2908 = vld [vmem:[%s7 + $0x38] sm:$0xf]
        %v2909 = vld [vmem:[%s7 + $0x3c] sm:$0xf]
        %v2910 = vld [vmem:[%s8] sm:$0x1]
        %v2927 = vunpack.c.l.b16 %v2894
        %v2928 = vunpack.c.l.b16 %v2895
        %v2929 = vunpack.c.l.b16 %v2896
        %v2930 = vunpack.c.l.b16 %v2897
        %v2931 = vunpack.c.l.b16 %v2898
        %v2932 = vunpack.c.l.b16 %v2899
        %v2933 = vunpack.c.l.b16 %v2900
        %v2934 = vunpack.c.l.b16 %v2901
        %v2935 = vunpack.c.l.b16 %v2902
        %v2936 = vunpack.c.l.b16 %v2903
        %v2937 = vunpack.c.l.b16 %v2904
        %v2938 = vunpack.c.l.b16 %v2905
        %v2939 = vunpack.c.l.b16 %v2906
        %v2940 = vunpack.c.l.b16 %v2907
        %v2941 = vunpack.c.l.b16 %v2908
        %v2942 = vunpack.c.l.b16 %v2909
        %v2943 = vpack.c.b16 %v2928, %v2927
        %v2944 = vpack.c.b16 %v2930, %v2929
        %v2945 = vpack.c.b16 %v2932, %v2931
        %v2946 = vpack.c.b16 %v2934, %v2933
        %v2947 = vpack.c.b16 %v2936, %v2935
        %v2948 = vpack.c.b16 %v2938, %v2937
        %v2949 = vpack.c.b16 %v2940, %v2939
        %v2950 = vpack.c.b16 %v2942, %v2941
        %2959 = vmatprep.subr.bf16.mxu0 0
        %2960 = vmatpush1.bf16.msra.mxu0 %v2943
        %2961 = vmatprep.subr.bf16.mxu0 0
        %2962 = vmatpush1.bf16.msra.mxu0 %v2944
        %2963 = vmatprep.subr.bf16.mxu0 0
        %2964 = vmatpush1.bf16.msra.mxu0 %v2945
        %2965 = vmatprep.subr.bf16.mxu0 0
        %2966 = vmatpush1.bf16.msra.mxu0 %v2946
        %2967 = vmatprep.subr.bf16.mxu0 0
        %2968 = vmatpush1.bf16.msra.mxu0 %v2947
        %2969 = vmatprep.subr.bf16.mxu0 0
        %2970 = vmatpush1.bf16.msra.mxu0 %v2948
        %2971 = vmatprep.subr.bf16.mxu0 0
        %2972 = vmatpush1.bf16.msra.mxu0 %v2949
        %2973 = vmatprep.subr.bf16.mxu0 0
        %2974 = vmatpush1.bf16.msra.mxu0 %v2950
        %2975 = vmatprep.subr.bf16.mxu0 0
        %2976 = vmatpush1.bf16.msra.mxu0 0
        %2977 = vmatprep.subr.bf16.mxu0 0
        %2978 = vmatpush1.bf16.msra.mxu0 0
        %2979 = vmatprep.subr.bf16.mxu0 0
        %2980 = vmatpush1.bf16.msra.mxu0 0
        %2981 = vmatprep.subr.bf16.mxu0 0
        %2982 = vmatpush1.bf16.msra.mxu0 0
        %2983 = vmatprep.subr.bf16.mxu0 0
        %2984 = vmatpush1.bf16.msra.mxu0 0
        %2985 = vmatprep.subr.bf16.mxu0 0
        %2986 = vmatpush1.bf16.msra.mxu0 0
        %2987 = vmatprep.subr.bf16.mxu0 0
        %2988 = vmatpush1.bf16.msra.mxu0 0
        %2989 = vmatprep.subr.bf16.mxu0 0
        %2990 = vmatpush1.bf16.msra.mxu0 0
        %2991 = vmatprep.mubr.bf16.mxu0 0
        %2992 = vmatmul.mubr.bf16.gmra.mrb[0].mxu0 %v2893
        %v2993 = vpop.f32.mrb[0].mxu0
        %v2994 = vadd.f32 %v2910, %v2993
        %v2995 = vpop.f32.mrb[0].mxu0
        %v2996 = vpop.f32.mrb[0].mxu0
        %v2997 = vpop.f32.mrb[0].mxu0
        %2998 = vdwg.mxu0
        %v2999 = vmax.f32 %v2994, 0.0
        %v3000 = vpack.c.bf16 %v2999, %v2999
        %v3001 = vld [vmem:[%s9] sm:$0xf]
        %v3002 = vld [vmem:[%s9 + $0x4] sm:$0xf]
        %v3003 = vld [vmem:[%s9 + $0x8] sm:$0xf]
        %v3004 = vld [vmem:[%s9 + $0xc] sm:$0xf]
        %v3005 = vld [vmem:[%s9 + $0x10] sm:$0xf]
        %v3006 = vld [vmem:[%s9 + $0x14] sm:$0xf]
        %v3007 = vld [vmem:[%s9 + $0x18] sm:$0xf]
        %v3008 = vld [vmem:[%s9 + $0x1c] sm:$0xf]
        %v3009 = vld [vmem:[%s9 + $0x20] sm:$0xf]
        %v3010 = vld [vmem:[%s9 + $0x24] sm:$0xf]
        %v3011 = vld [vmem:[%s9 + $0x28] sm:$0xf]
        %v3012 = vld [vmem:[%s9 + $0x2c] sm:$0xf]
        %v3013 = vld [vmem:[%s9 + $0x30] sm:$0xf]
        %v3014 = vld [vmem:[%s9 + $0x34] sm:$0xf]
        %v3015 = vld [vmem:[%s9 + $0x38] sm:$0xf]
        %v3016 = vld [vmem:[%s9 + $0x3c] sm:$0xf]
        %v3017 = vld [vmem:[%s10] sm:$0x1]
        %v3034 = vunpack.c.l.b16 %v3001
        %v3035 = vunpack.c.l.b16 %v3002
        %v3036 = vunpack.c.l.b16 %v3003
        %v3037 = vunpack.c.l.b16 %v3004
        %v3038 = vunpack.c.l.b16 %v3005
        %v3039 = vunpack.c.l.b16 %v3006
        %v3040 = vunpack.c.l.b16 %v3007
        %v3041 = vunpack.c.l.b16 %v3008
        %v3042 = vunpack.c.l.b16 %v3009
        %v3043 = vunpack.c.l.b16 %v3010
        %v3044 = vunpack.c.l.b16 %v3011
        %v3045 = vunpack.c.l.b16 %v3012
        %v3046 = vunpack.c.l.b16 %v3013
        %v3047 = vunpack.c.l.b16 %v3014
        %v3048 = vunpack.c.l.b16 %v3015
        %v3049 = vunpack.c.l.b16 %v3016
        %v3050 = vpack.c.b16 %v3035, %v3034
        %v3051 = vpack.c.b16 %v3037, %v3036
        %v3052 = vpack.c.b16 %v3039, %v3038
        %v3053 = vpack.c.b16 %v3041, %v3040
        %v3054 = vpack.c.b16 %v3043, %v3042
        %v3055 = vpack.c.b16 %v3045, %v3044
        %v3056 = vpack.c.b16 %v3047, %v3046
        %v3057 = vpack.c.b16 %v3049, %v3048
        %3066 = vmatprep.subr.bf16.mxu0 0
        %3067 = vmatpush1.bf16.msra.mxu0 %v3050
        %3068 = vmatprep.subr.bf16.mxu0 0
        %3069 = vmatpush1.bf16.msra.mxu0 %v3051
        %3070 = vmatprep.subr.bf16.mxu0 0
        %3071 = vmatpush1.bf16.msra.mxu0 %v3052
        %3072 = vmatprep.subr.bf16.mxu0 0
        %3073 = vmatpush1.bf16.msra.mxu0 %v3053
        %3074 = vmatprep.subr.bf16.mxu0 0
        %3075 = vmatpush1.bf16.msra.mxu0 %v3054
        %3076 = vmatprep.subr.bf16.mxu0 0
        %3077 = vmatpush1.bf16.msra.mxu0 %v3055
        %3078 = vmatprep.subr.bf16.mxu0 0
        %3079 = vmatpush1.bf16.msra.mxu0 %v3056
        %3080 = vmatprep.subr.bf16.mxu0 0
        %3081 = vmatpush1.bf16.msra.mxu0 %v3057
        %3082 = vmatprep.subr.bf16.mxu0 0
        %3083 = vmatpush1.bf16.msra.mxu0 0
        %3084 = vmatprep.subr.bf16.mxu0 0
        %3085 = vmatpush1.bf16.msra.mxu0 0
        %3086 = vmatprep.subr.bf16.mxu0 0
        %3087 = vmatpush1.bf16.msra.mxu0 0
        %3088 = vmatprep.subr.bf16.mxu0 0
        %3089 = vmatpush1.bf16.msra.mxu0 0
        %3090 = vmatprep.subr.bf16.mxu0 0
        %3091 = vmatpush1.bf16.msra.mxu0 0
        %3092 = vmatprep.subr.bf16.mxu0 0
        %3093 = vmatpush1.bf16.msra.mxu0 0
        %3094 = vmatprep.subr.bf16.mxu0 0
        %3095 = vmatpush1.bf16.msra.mxu0 0
        %3096 = vmatprep.subr.bf16.mxu0 0
        %3097 = vmatpush1.bf16.msra.mxu0 0
        %3098 = vmatprep.mubr.bf16.mxu0 0
        %3099 = vmatmul.mubr.bf16.gmra.mrb[0].mxu0 %v3000
        %v3100 = vpop.f32.mrb[0].mxu0
        %v3101 = vadd.f32 %v3017, %v3100
        %v3102 = vpop.f32.mrb[0].mxu0
        %v3103 = vpop.f32.mrb[0].mxu0
        %v3104 = vpop.f32.mrb[0].mxu0
        %3105 = vdwg.mxu0
        %3106 = vst [vmem:[%s408] sm:$0x1] %v3101
        %s3107 = sand.u32 %s271, 1
        %s3108 = scalar_lea.sflag [#allocation4], %s3107
        %s3109 = sand.u32 %s271, 1
        %s3110 = scalar_lea.vmem [#allocation7], %s3109
        // Predicated region
        $region73: #{net_forward.1} parent=63 // pred_check
          %p3111 = pneg %p281
        $region74: #{net_forward.1} parent=63 // pred_check_branch
          %3113 = sbr.rel (%p3111) target = $region76
        $region75: #{net_forward.1} parent=63 // pred_region
          %s3115 = ssub.s32 16, 16
          %3116 = vsyncadd %s3108, %s3115
          %s3117 = smul.addr %s27, 16
          %s3118 = scalar_lea.hbm %s11, %s3117
          %s3120 = sshll.u32 %s3110, 4
          %s3121 = int_to_ptr.vmem [resolvable:$true] %s3120
          %3123 = dma.vmem_to_hbm [thread:$0]  %s3121, 16, %s3118, %s3108
        $region76: #{net_forward.1} parent=63 // pred_fallthru
          _
      $region64: #{net_forward.1} parent=5 // pred_fallthru
        _
      %p3124 = scmp.le.s32.totalorder 2, %s22
      // Predicated region
      $region77: #{net_forward.1} parent=5 // pred_check
        %p3125 = pneg %p3124
      $region78: #{net_forward.1} parent=5 // pred_check_branch
        %3127 = sbr.rel (%p3125) target = $region80
      $region79: #{net_forward.1} parent=5 // pred_region
        %s3128 = ssub.s32 %s22, 2
        // Predicated region
        $region81: #{net_forward.1} parent=79 // pred_check
          %p3129 = pneg %p287
        $region82: #{net_forward.1} parent=79 // pred_check_branch
          %3131 = sbr.rel (%p3129) target = $region84
        $region83: #{net_forward.1} parent=79 // pred_region
          %s3132 = sand.u32 %s272, 1
          %s3133 = scalar_lea.sflag [#allocation4], %s3132
          %s3134 = sand.u32 %s272, 1
          %s3135 = scalar_lea.vmem [#allocation7], %s3134
          %3136 = dma.done %s3133, 16
        $region84: #{net_forward.1} parent=79 // pred_fallthru
          _
      $region80: #{net_forward.1} parent=5 // pred_fallthru
        _
    $region6: #{net_forward.1} parent=1 // loop_footer
      %s26 = sadd.s32 1, %s22
    $region7: #{net_forward.1} parent=1 // loop_footer_branch
      %21 = sbr.rel target = $region3
    $region8: #{net_forward.1} parent=1 // loop_exit
      _
    %3137 = vsyncpa [#allocation3], 1
    %s3138 = scalar_lea.sflag [#allocation3], 1
    %3139 = vsyncpa %s3138, 1
    %3140 = vsyncpa [#allocation6], 1
    %3141 = vsyncpa [#allocation4], 1
    %s3142 = scalar_lea.sflag [#allocation4], 1
    %3143 = vsyncpa %s3142, 1

</llo_original>
